<compile_context>
chip_gen: v5e
topology: v5e:2x2
jax: 0.10.0
libtpu: 0.0.40
codegen_flags: <defaults>
</compile_context>

<pallas_src>
import functools
import math

import jax
import jax.numpy as jnp
from jax import lax
from jax.experimental import pallas as pl
from jax.experimental.pallas import tpu as pltpu  # noqa: F401  (TPU backend)

P = 128          # lane pad: every feature / node axis padded to one lane tile
NUM_CLASSES = 3  # fc2 output width of the original module


# --------------------------------------------------------------------------
# Single fused kernel
# --------------------------------------------------------------------------
def fused_fusion_kernel(adj2_ref, x2_ref, wg1_ref, wg2_ref, wd_ref, bd_ref,
                        al_ref, wal_ref, bal_ref,
                        w1fc_ref, b1fc_ref, w2fc_ref, b2fc_ref,
                        out_ref, *, gcn_out_dim):
    f32, bf16 = jnp.float32, jnp.bfloat16

    col = lax.broadcasted_iota(jnp.int32, (P, P), 1)
    gcn_mask = col < gcn_out_dim       # valid GCN output columns
    cls_mask = col < NUM_CLASSES       # valid class-logit columns

    branch_feats = []
    for i in range(2):                 # i=0: KG branch, i=1: BG branch (static unroll)
        adj = adj2_ref[i]              # [P, P] bf16
        x = x2_ref[i]                  # [P, P] bf16

        # GCN layer 1: relu(adj @ (x @ W1)), f32 MXU accumulation
        s1 = jnp.dot(x, wg1_ref[i], preferred_element_type=f32)
        h = jnp.maximum(
            jnp.dot(adj, s1.astype(bf16), preferred_element_type=f32), 0.0)
        # TODO(synk): nn.Dropout omitted (identity in eval mode).

        # GCN layer 2: adj @ (h @ W2)
        s2 = jnp.dot(h.astype(bf16), wg2_ref[i], preferred_element_type=f32)
        z = jnp.dot(adj, s2.astype(bf16), preferred_element_type=f32)

        # log_softmax over dim=1, restricted to the real (unpadded) columns
        zm = jnp.where(gcn_mask, z, -1e30)
        m = jnp.max(zm, axis=1, keepdims=True)
        s = zm - m
        lse = jnp.log(jnp.sum(jnp.exp(s), axis=1, keepdims=True))
        logsm = jnp.where(gcn_mask, s - lse, 0.0)   # zero the pad columns

        # Branch DenseLayer -> (padded) concat_dim
        feat = jnp.dot(logsm.astype(bf16), wd_ref[i],
                       preferred_element_type=f32) + bd_ref[i]
        branch_feats.append(feat)

    # A_L DenseLayer
    al_feat = jnp.dot(al_ref[...], wal_ref[...],
                      preferred_element_type=f32) + bal_ref[...]

    # concat(dim=1) -> flatten -> fc1 as ONE lane-concatenated matmul
    concat = jnp.concatenate([branch_feats[0].astype(bf16),
                              branch_feats[1].astype(bf16),
                              al_feat.astype(bf16)], axis=-1)       # [P, 3P]
    h1 = jnp.dot(concat, w1fc_ref[...], preferred_element_type=f32) + b1fc_ref[...]

    # fc2 + softmax (masked to the 3 real classes)
    logits = jnp.dot(h1.astype(bf16), w2fc_ref[...],
                     preferred_element_type=f32) + b2fc_ref[...]
    lm = jnp.where(cls_mask, logits, -1e30)
    m = jnp.max(lm, axis=-1, keepdims=True)
    e = jnp.exp(lm - m)
    denom = jnp.sum(e, axis=-1, keepdims=True)
    out_ref[...] = e * pl.reciprocal(denom, approx=True)


# --------------------------------------------------------------------------
# Host-side parameter construction / padding
# --------------------------------------------------------------------------
def _pad2(x, rows, cols):
    return jnp.pad(x, ((0, rows - x.shape[0]), (0, cols - x.shape[1])))


def init_params(key, KG_in, BG_in, AL_in, hidden, out_dim, concat_dim):
    """Logical (unpadded) parameters, matching the PyTorch module layout
    (Linear weights stored transposed as [in, out]; biases as [1, out])."""
    ks = jax.random.split(key, 14)

    def u(k, shape, scale):
        return jax.random.uniform(k, shape, jnp.float32, -scale, scale)

    p = {}
    p["kg_gcn_w1"] = u(ks[0], (KG_in, hidden), math.sqrt(hidden))
    p["kg_gcn_w2"] = u(ks[1], (hidden, out_dim), math.sqrt(out_dim))
    p["bg_gcn_w1"] = u(ks[2], (BG_in, hidden), math.sqrt(hidden))
    p["bg_gcn_w2"] = u(ks[3], (hidden, out_dim), math.sqrt(out_dim))
    p["kg_dense_w"] = u(ks[4], (KG_in, concat_dim), 1.0 / math.sqrt(KG_in))
    p["kg_dense_b"] = u(ks[5], (1, concat_dim), 1.0 / math.sqrt(KG_in))
    p["bg_dense_w"] = u(ks[6], (BG_in, concat_dim), 1.0 / math.sqrt(BG_in))
    p["bg_dense_b"] = u(ks[7], (1, concat_dim), 1.0 / math.sqrt(BG_in))
    p["al_dense_w"] = u(ks[8], (AL_in, concat_dim), 1.0 / math.sqrt(AL_in))
    p["al_dense_b"] = u(ks[9], (1, concat_dim), 1.0 / math.sqrt(AL_in))
    p["fc1_w"] = u(ks[10], (3 * concat_dim, hidden), 1.0 / math.sqrt(3 * concat_dim))
    p["fc1_b"] = u(ks[11], (1, hidden), 1.0 / math.sqrt(3 * concat_dim))
    p["fc2_w"] = u(ks[12], (hidden, 3), 1.0 / math.sqrt(hidden))
    p["fc2_b"] = u(ks[13], (1, 3), 1.0 / math.sqrt(hidden))
    return p


def prepare_kernel_params(p, concat_dim, hidden):
    """Pad to lane tiles, stack the two branches, cast MXU inputs to bf16."""
    bf16 = jnp.bfloat16
    kp = {}
    kp["wg1"] = jnp.stack([_pad2(p["kg_gcn_w1"], P, P),
                           _pad2(p["bg_gcn_w1"], P, P)]).astype(bf16)
    kp["wg2"] = jnp.stack([_pad2(p["kg_gcn_w2"], P, P),
                           _pad2(p["bg_gcn_w2"], P, P)]).astype(bf16)
    kp["wd"] = jnp.stack([_pad2(p["kg_dense_w"], P, P),
                          _pad2(p["bg_dense_w"], P, P)]).astype(bf16)
    kp["bd"] = jnp.stack([_pad2(p["kg_dense_b"], 1, P),
                          _pad2(p["bg_dense_b"], 1, P)])              # f32
    kp["wal"] = _pad2(p["al_dense_w"], P, P).astype(bf16)
    kp["bal"] = _pad2(p["al_dense_b"], 1, P)                          # f32
    # fc1 weight [3*concat_dim, hidden] re-laid-out at lane-aligned row offsets
    # 0 / P / 2P so it matches the in-kernel lane-concatenated activation.
    w1 = p["fc1_w"]
    w1fc = jnp.zeros((3 * P, P), jnp.float32)
    w1fc = w1fc.at[0:concat_dim, 0:hidden].set(w1[0:concat_dim])
    w1fc = w1fc.at[P:P + concat_dim, 0:hidden].set(w1[concat_dim:2 * concat_dim])
    w1fc = w1fc.at[2 * P:2 * P + concat_dim, 0:hidden].set(w1[2 * concat_dim:])
    kp["w1fc"] = w1fc.astype(bf16)
    kp["b1fc"] = _pad2(p["fc1_b"], 1, P)                              # f32
    kp["w2fc"] = _pad2(p["fc2_w"], P, P).astype(bf16)
    kp["b2fc"] = _pad2(p["fc2_b"], 1, P)                              # f32
    return kp


# --------------------------------------------------------------------------
# Full forward: one pallas_call for the entire module
# --------------------------------------------------------------------------
def fusion_forward(kp, KG_feature, KG_adj, A_L, BG_feature, BG_adj, out_dim):
    n = KG_feature.shape[0]
    bf16 = jnp.bfloat16
    adj2 = jnp.stack([_pad2(KG_adj, P, P), _pad2(BG_adj, P, P)]).astype(bf16)
    x2 = jnp.stack([_pad2(KG_feature, P, P), _pad2(BG_feature, P, P)]).astype(bf16)
    al = _pad2(A_L, P, P).astype(bf16)

    out_pad = pl.pallas_call(
        functools.partial(fused_fusion_kernel, gcn_out_dim=out_dim),
        out_shape=jax.ShapeDtypeStruct((P, P), jnp.float32),
    )(adj2, x2, kp["wg1"], kp["wg2"], kp["wd"], kp["bd"],
      al, kp["wal"], kp["bal"],
      kp["w1fc"], kp["b1fc"], kp["w2fc"], kp["b2fc"])
    return out_pad[:n, :NUM_CLASSES]


if __name__ == "__main__":
    # small synthetic shapes
    N = 8              # KG_num == BG_num == max_KG_num (required by cat(dim=1))
    KG_in = 16
    BG_in = 16
    hidden = 32
    out_dim = 16       # must equal KG_in / BG_in so KG_Dense / BG_Dense apply
    concat_dim = 8
    AL_in = N          # A_L: [max_KG_num, BG_num]

    key = jax.random.PRNGKey(0)
    kparam_key, kdata_key = jax.random.split(key)
    params = init_params(kparam_key, KG_in, BG_in, AL_in, hidden, out_dim, concat_dim)
    kparams = prepare_kernel_params(params, concat_dim, hidden)

    ks = jax.random.split(kdata_key, 5)
    KG_feature = jax.random.normal(ks[0], (N, KG_in), jnp.float32)
    BG_feature = jax.random.normal(ks[1], (N, BG_in), jnp.float32)
    KG_adj = jax.random.uniform(ks[2], (N, N), jnp.float32)
    BG_adj = jax.random.uniform(ks[3], (N, N), jnp.float32)
    A_L = jax.random.normal(ks[4], (N, AL_in), jnp.float32)

    out = fusion_forward(kparams, KG_feature, KG_adj, A_L, BG_feature, BG_adj, out_dim)
    out = jax.block_until_ready(out)
    assert out.shape == (N, NUM_CLASSES)
    assert bool(jnp.all(jnp.isfinite(out)))
    # rows of a softmax sum to ~1 (approx reciprocal + bf16 MXU inputs)
    assert bool(jnp.allclose(jnp.sum(out, axis=-1), 1.0, atol=1e-2))
    print("KERNEL_OK")
</pallas_src>

<mosaic_0001>
module attributes {stable_mosaic.version = 11 : i64} {
  func.func @fused_fusion_kernel(%arg0: memref<2x128x128xbf16, #tpu.memory_space<vmem>>, %arg1: memref<2x128x128xbf16, #tpu.memory_space<vmem>>, %arg2: memref<2x128x128xbf16, #tpu.memory_space<vmem>>, %arg3: memref<2x128x128xbf16, #tpu.memory_space<vmem>>, %arg4: memref<2x128x128xbf16, #tpu.memory_space<vmem>>, %arg5: memref<2x1x128xf32, #tpu.memory_space<vmem>>, %arg6: memref<128x128xbf16, #tpu.memory_space<vmem>>, %arg7: memref<128x128xbf16, #tpu.memory_space<vmem>>, %arg8: memref<1x128xf32, #tpu.memory_space<vmem>>, %arg9: memref<384x128xbf16, #tpu.memory_space<vmem>>, %arg10: memref<1x128xf32, #tpu.memory_space<vmem>>, %arg11: memref<128x128xbf16, #tpu.memory_space<vmem>>, %arg12: memref<1x128xf32, #tpu.memory_space<vmem>>, %arg13: memref<128x128xf32, #tpu.memory_space<vmem>>) attributes {dimension_semantics = [], scalar_prefetch = 0 : i64, scratch_operands = 0 : i64, tpu.core_type = #tpu.core_type<tc>} {
    %0 = tpu.iota {dimensions = array<i32: 1>} : vector<128x128xi32>
    %c16_i32 = arith.constant 16 : i32
    %1 = vector.broadcast %c16_i32 : i32 to vector<128x128xi32>
    %2 = arith.cmpi slt, %0, %1 : vector<128x128xi32>
    %c3_i32 = arith.constant 3 : i32
    %3 = vector.broadcast %c3_i32 : i32 to vector<128x128xi32>
    %4 = arith.cmpi slt, %0, %3 : vector<128x128xi32>
    %c0 = arith.constant 0 : index
    %c0_0 = arith.constant 0 : index
    %c0_1 = arith.constant 0 : index
    %5 = vector.load %arg0[%c0, %c0_0, %c0_1] : memref<2x128x128xbf16, #tpu.memory_space<vmem>>, vector<1x128x128xbf16>
    %6 = vector.shape_cast %5 : vector<1x128x128xbf16> to vector<128x128xbf16>
    %c0_2 = arith.constant 0 : index
    %c0_3 = arith.constant 0 : index
    %c0_4 = arith.constant 0 : index
    %7 = vector.load %arg1[%c0_2, %c0_3, %c0_4] : memref<2x128x128xbf16, #tpu.memory_space<vmem>>, vector<1x128x128xbf16>
    %8 = vector.shape_cast %7 : vector<1x128x128xbf16> to vector<128x128xbf16>
    %c0_5 = arith.constant 0 : index
    %c0_6 = arith.constant 0 : index
    %c0_7 = arith.constant 0 : index
    %9 = vector.load %arg2[%c0_5, %c0_6, %c0_7] : memref<2x128x128xbf16, #tpu.memory_space<vmem>>, vector<1x128x128xbf16>
    %10 = vector.shape_cast %9 : vector<1x128x128xbf16> to vector<128x128xbf16>
    %cst = arith.constant dense<0.000000e+00> : vector<128x128xf32>
    %11 = tpu.matmul %8, %10, %cst {dimension_numbers = #tpu.dot_dimension_numbers<[1], [0], [0], [1], [0, 0, 1, 1], [], []>} : vector<128x128xbf16>, vector<128x128xbf16>, vector<128x128xf32> -> vector<128x128xf32>
    %12 = arith.truncf %11 : vector<128x128xf32> to vector<128x128xbf16>
    %cst_8 = arith.constant dense<0.000000e+00> : vector<128x128xf32>
    %13 = tpu.matmul %6, %12, %cst_8 {dimension_numbers = #tpu.dot_dimension_numbers<[1], [0], [0], [1], [0, 0, 1, 1], [], []>} : vector<128x128xbf16>, vector<128x128xbf16>, vector<128x128xf32> -> vector<128x128xf32>
    %cst_9 = arith.constant 0.000000e+00 : f32
    %14 = vector.broadcast %cst_9 : f32 to vector<128x128xf32>
    %15 = arith.maximumf %13, %14 : vector<128x128xf32>
    %16 = arith.truncf %15 : vector<128x128xf32> to vector<128x128xbf16>
    %c0_10 = arith.constant 0 : index
    %c0_11 = arith.constant 0 : index
    %c0_12 = arith.constant 0 : index
    %17 = vector.load %arg3[%c0_10, %c0_11, %c0_12] : memref<2x128x128xbf16, #tpu.memory_space<vmem>>, vector<1x128x128xbf16>
    %18 = vector.shape_cast %17 : vector<1x128x128xbf16> to vector<128x128xbf16>
    %cst_13 = arith.constant dense<0.000000e+00> : vector<128x128xf32>
    %19 = tpu.matmul %16, %18, %cst_13 {dimension_numbers = #tpu.dot_dimension_numbers<[1], [0], [0], [1], [0, 0, 1, 1], [], []>} : vector<128x128xbf16>, vector<128x128xbf16>, vector<128x128xf32> -> vector<128x128xf32>
    %20 = arith.truncf %19 : vector<128x128xf32> to vector<128x128xbf16>
    %cst_14 = arith.constant dense<0.000000e+00> : vector<128x128xf32>
    %21 = tpu.matmul %6, %20, %cst_14 {dimension_numbers = #tpu.dot_dimension_numbers<[1], [0], [0], [1], [0, 0, 1, 1], [], []>} : vector<128x128xbf16>, vector<128x128xbf16>, vector<128x128xf32> -> vector<128x128xf32>
    %cst_15 = arith.constant -1.000000e+30 : f32
    %22 = vector.broadcast %cst_15 : f32 to vector<128x128xf32>
    %23 = arith.select %2, %21, %22 : vector<128x128xi1>, vector<128x128xf32>
    %cst_16 = arith.constant dense<0xFF800000> : vector<128xf32>
    %24 = vector.multi_reduction <maximumf>, %23, %cst_16 [1] : vector<128x128xf32> to vector<128xf32>
    %25 = vector.shape_cast %24 : vector<128xf32> to vector<128x1xf32>
    %26 = vector.broadcast %25 : vector<128x1xf32> to vector<128x128xf32>
    %27 = arith.subf %23, %26 : vector<128x128xf32>
    %28 = math.exp %27 : vector<128x128xf32>
    %cst_17 = arith.constant dense<0.000000e+00> : vector<128xf32>
    %29 = vector.multi_reduction <add>, %28, %cst_17 [1] : vector<128x128xf32> to vector<128xf32>
    %30 = vector.shape_cast %29 : vector<128xf32> to vector<128x1xf32>
    %31 = math.log %30 : vector<128x1xf32>
    %32 = vector.broadcast %31 : vector<128x1xf32> to vector<128x128xf32>
    %33 = arith.subf %27, %32 : vector<128x128xf32>
    %cst_18 = arith.constant 0.000000e+00 : f32
    %34 = vector.broadcast %cst_18 : f32 to vector<128x128xf32>
    %35 = arith.select %2, %33, %34 : vector<128x128xi1>, vector<128x128xf32>
    %36 = arith.truncf %35 : vector<128x128xf32> to vector<128x128xbf16>
    %c0_19 = arith.constant 0 : index
    %c0_20 = arith.constant 0 : index
    %c0_21 = arith.constant 0 : index
    %37 = vector.load %arg4[%c0_19, %c0_20, %c0_21] : memref<2x128x128xbf16, #tpu.memory_space<vmem>>, vector<1x128x128xbf16>
    %38 = vector.shape_cast %37 : vector<1x128x128xbf16> to vector<128x128xbf16>
    %cst_22 = arith.constant dense<0.000000e+00> : vector<128x128xf32>
    %39 = tpu.matmul %36, %38, %cst_22 {dimension_numbers = #tpu.dot_dimension_numbers<[1], [0], [0], [1], [0, 0, 1, 1], [], []>} : vector<128x128xbf16>, vector<128x128xbf16>, vector<128x128xf32> -> vector<128x128xf32>
    %c0_23 = arith.constant 0 : index
    %c0_24 = arith.constant 0 : index
    %c0_25 = arith.constant 0 : index
    %40 = vector.load %arg5[%c0_23, %c0_24, %c0_25] : memref<2x1x128xf32, #tpu.memory_space<vmem>>, vector<1x1x128xf32>
    %41 = vector.shape_cast %40 : vector<1x1x128xf32> to vector<1x128xf32>
    %42 = vector.broadcast %41 : vector<1x128xf32> to vector<128x128xf32>
    %43 = arith.addf %39, %42 : vector<128x128xf32>
    %c1 = arith.constant 1 : index
    %c0_26 = arith.constant 0 : index
    %c0_27 = arith.constant 0 : index
    %44 = vector.load %arg0[%c1, %c0_26, %c0_27] : memref<2x128x128xbf16, #tpu.memory_space<vmem>>, vector<1x128x128xbf16>
    %45 = vector.shape_cast %44 : vector<1x128x128xbf16> to vector<128x128xbf16>
    %c1_28 = arith.constant 1 : index
    %c0_29 = arith.constant 0 : index
    %c0_30 = arith.constant 0 : index
    %46 = vector.load %arg1[%c1_28, %c0_29, %c0_30] : memref<2x128x128xbf16, #tpu.memory_space<vmem>>, vector<1x128x128xbf16>
    %47 = vector.shape_cast %46 : vector<1x128x128xbf16> to vector<128x128xbf16>
    %c1_31 = arith.constant 1 : index
    %c0_32 = arith.constant 0 : index
    %c0_33 = arith.constant 0 : index
    %48 = vector.load %arg2[%c1_31, %c0_32, %c0_33] : memref<2x128x128xbf16, #tpu.memory_space<vmem>>, vector<1x128x128xbf16>
    %49 = vector.shape_cast %48 : vector<1x128x128xbf16> to vector<128x128xbf16>
    %cst_34 = arith.constant dense<0.000000e+00> : vector<128x128xf32>
    %50 = tpu.matmul %47, %49, %cst_34 {dimension_numbers = #tpu.dot_dimension_numbers<[1], [0], [0], [1], [0, 0, 1, 1], [], []>} : vector<128x128xbf16>, vector<128x128xbf16>, vector<128x128xf32> -> vector<128x128xf32>
    %51 = arith.truncf %50 : vector<128x128xf32> to vector<128x128xbf16>
    %cst_35 = arith.constant dense<0.000000e+00> : vector<128x128xf32>
    %52 = tpu.matmul %45, %51, %cst_35 {dimension_numbers = #tpu.dot_dimension_numbers<[1], [0], [0], [1], [0, 0, 1, 1], [], []>} : vector<128x128xbf16>, vector<128x128xbf16>, vector<128x128xf32> -> vector<128x128xf32>
    %cst_36 = arith.constant 0.000000e+00 : f32
    %53 = vector.broadcast %cst_36 : f32 to vector<128x128xf32>
    %54 = arith.maximumf %52, %53 : vector<128x128xf32>
    %55 = arith.truncf %54 : vector<128x128xf32> to vector<128x128xbf16>
    %c1_37 = arith.constant 1 : index
    %c0_38 = arith.constant 0 : index
    %c0_39 = arith.constant 0 : index
    %56 = vector.load %arg3[%c1_37, %c0_38, %c0_39] : memref<2x128x128xbf16, #tpu.memory_space<vmem>>, vector<1x128x128xbf16>
    %57 = vector.shape_cast %56 : vector<1x128x128xbf16> to vector<128x128xbf16>
    %cst_40 = arith.constant dense<0.000000e+00> : vector<128x128xf32>
    %58 = tpu.matmul %55, %57, %cst_40 {dimension_numbers = #tpu.dot_dimension_numbers<[1], [0], [0], [1], [0, 0, 1, 1], [], []>} : vector<128x128xbf16>, vector<128x128xbf16>, vector<128x128xf32> -> vector<128x128xf32>
    %59 = arith.truncf %58 : vector<128x128xf32> to vector<128x128xbf16>
    %cst_41 = arith.constant dense<0.000000e+00> : vector<128x128xf32>
    %60 = tpu.matmul %45, %59, %cst_41 {dimension_numbers = #tpu.dot_dimension_numbers<[1], [0], [0], [1], [0, 0, 1, 1], [], []>} : vector<128x128xbf16>, vector<128x128xbf16>, vector<128x128xf32> -> vector<128x128xf32>
    %cst_42 = arith.constant -1.000000e+30 : f32
    %61 = vector.broadcast %cst_42 : f32 to vector<128x128xf32>
    %62 = arith.select %2, %60, %61 : vector<128x128xi1>, vector<128x128xf32>
    %cst_43 = arith.constant dense<0xFF800000> : vector<128xf32>
    %63 = vector.multi_reduction <maximumf>, %62, %cst_43 [1] : vector<128x128xf32> to vector<128xf32>
    %64 = vector.shape_cast %63 : vector<128xf32> to vector<128x1xf32>
    %65 = vector.broadcast %64 : vector<128x1xf32> to vector<128x128xf32>
    %66 = arith.subf %62, %65 : vector<128x128xf32>
    %67 = math.exp %66 : vector<128x128xf32>
    %cst_44 = arith.constant dense<0.000000e+00> : vector<128xf32>
    %68 = vector.multi_reduction <add>, %67, %cst_44 [1] : vector<128x128xf32> to vector<128xf32>
    %69 = vector.shape_cast %68 : vector<128xf32> to vector<128x1xf32>
    %70 = math.log %69 : vector<128x1xf32>
    %71 = vector.broadcast %70 : vector<128x1xf32> to vector<128x128xf32>
    %72 = arith.subf %66, %71 : vector<128x128xf32>
    %cst_45 = arith.constant 0.000000e+00 : f32
    %73 = vector.broadcast %cst_45 : f32 to vector<128x128xf32>
    %74 = arith.select %2, %72, %73 : vector<128x128xi1>, vector<128x128xf32>
    %75 = arith.truncf %74 : vector<128x128xf32> to vector<128x128xbf16>
    %c1_46 = arith.constant 1 : index
    %c0_47 = arith.constant 0 : index
    %c0_48 = arith.constant 0 : index
    %76 = vector.load %arg4[%c1_46, %c0_47, %c0_48] : memref<2x128x128xbf16, #tpu.memory_space<vmem>>, vector<1x128x128xbf16>
    %77 = vector.shape_cast %76 : vector<1x128x128xbf16> to vector<128x128xbf16>
    %cst_49 = arith.constant dense<0.000000e+00> : vector<128x128xf32>
    %78 = tpu.matmul %75, %77, %cst_49 {dimension_numbers = #tpu.dot_dimension_numbers<[1], [0], [0], [1], [0, 0, 1, 1], [], []>} : vector<128x128xbf16>, vector<128x128xbf16>, vector<128x128xf32> -> vector<128x128xf32>
    %c1_50 = arith.constant 1 : index
    %c0_51 = arith.constant 0 : index
    %c0_52 = arith.constant 0 : index
    %79 = vector.load %arg5[%c1_50, %c0_51, %c0_52] : memref<2x1x128xf32, #tpu.memory_space<vmem>>, vector<1x1x128xf32>
    %80 = vector.shape_cast %79 : vector<1x1x128xf32> to vector<1x128xf32>
    %81 = vector.broadcast %80 : vector<1x128xf32> to vector<128x128xf32>
    %82 = arith.addf %78, %81 : vector<128x128xf32>
    %c0_53 = arith.constant 0 : index
    %c0_54 = arith.constant 0 : index
    %83 = vector.load %arg6[%c0_53, %c0_54] : memref<128x128xbf16, #tpu.memory_space<vmem>>, vector<128x128xbf16>
    %c0_55 = arith.constant 0 : index
    %c0_56 = arith.constant 0 : index
    %84 = vector.load %arg7[%c0_55, %c0_56] : memref<128x128xbf16, #tpu.memory_space<vmem>>, vector<128x128xbf16>
    %cst_57 = arith.constant dense<0.000000e+00> : vector<128x128xf32>
    %85 = tpu.matmul %83, %84, %cst_57 {dimension_numbers = #tpu.dot_dimension_numbers<[1], [0], [0], [1], [0, 0, 1, 1], [], []>} : vector<128x128xbf16>, vector<128x128xbf16>, vector<128x128xf32> -> vector<128x128xf32>
    %c0_58 = arith.constant 0 : index
    %c0_59 = arith.constant 0 : index
    %86 = vector.load %arg8[%c0_58, %c0_59] : memref<1x128xf32, #tpu.memory_space<vmem>>, vector<1x128xf32>
    %87 = vector.broadcast %86 : vector<1x128xf32> to vector<128x128xf32>
    %88 = arith.addf %85, %87 : vector<128x128xf32>
    %89 = arith.truncf %43 : vector<128x128xf32> to vector<128x128xbf16>
    %90 = arith.truncf %82 : vector<128x128xf32> to vector<128x128xbf16>
    %91 = arith.truncf %88 : vector<128x128xf32> to vector<128x128xbf16>
    %92 = tpu.concatenate %89, %90, %91 in 1 : vector<128x128xbf16>, vector<128x128xbf16>, vector<128x128xbf16> -> vector<128x384xbf16>
    %c0_60 = arith.constant 0 : index
    %c0_61 = arith.constant 0 : index
    %93 = vector.load %arg9[%c0_60, %c0_61] : memref<384x128xbf16, #tpu.memory_space<vmem>>, vector<384x128xbf16>
    %cst_62 = arith.constant dense<0.000000e+00> : vector<128x128xf32>
    %94 = tpu.matmul %92, %93, %cst_62 {dimension_numbers = #tpu.dot_dimension_numbers<[1], [0], [0], [1], [0, 0, 1, 1], [], []>} : vector<128x384xbf16>, vector<384x128xbf16>, vector<128x128xf32> -> vector<128x128xf32>
    %c0_63 = arith.constant 0 : index
    %c0_64 = arith.constant 0 : index
    %95 = vector.load %arg10[%c0_63, %c0_64] : memref<1x128xf32, #tpu.memory_space<vmem>>, vector<1x128xf32>
    %96 = vector.broadcast %95 : vector<1x128xf32> to vector<128x128xf32>
    %97 = arith.addf %94, %96 : vector<128x128xf32>
    %98 = arith.truncf %97 : vector<128x128xf32> to vector<128x128xbf16>
    %c0_65 = arith.constant 0 : index
    %c0_66 = arith.constant 0 : index
    %99 = vector.load %arg11[%c0_65, %c0_66] : memref<128x128xbf16, #tpu.memory_space<vmem>>, vector<128x128xbf16>
    %cst_67 = arith.constant dense<0.000000e+00> : vector<128x128xf32>
    %100 = tpu.matmul %98, %99, %cst_67 {dimension_numbers = #tpu.dot_dimension_numbers<[1], [0], [0], [1], [0, 0, 1, 1], [], []>} : vector<128x128xbf16>, vector<128x128xbf16>, vector<128x128xf32> -> vector<128x128xf32>
    %c0_68 = arith.constant 0 : index
    %c0_69 = arith.constant 0 : index
    %101 = vector.load %arg12[%c0_68, %c0_69] : memref<1x128xf32, #tpu.memory_space<vmem>>, vector<1x128xf32>
    %102 = vector.broadcast %101 : vector<1x128xf32> to vector<128x128xf32>
    %103 = arith.addf %100, %102 : vector<128x128xf32>
    %cst_70 = arith.constant -1.000000e+30 : f32
    %104 = vector.broadcast %cst_70 : f32 to vector<128x128xf32>
    %105 = arith.select %4, %103, %104 : vector<128x128xi1>, vector<128x128xf32>
    %cst_71 = arith.constant dense<0xFF800000> : vector<128xf32>
    %106 = vector.multi_reduction <maximumf>, %105, %cst_71 [1] : vector<128x128xf32> to vector<128xf32>
    %107 = vector.shape_cast %106 : vector<128xf32> to vector<128x1xf32>
    %108 = vector.broadcast %107 : vector<128x1xf32> to vector<128x128xf32>
    %109 = arith.subf %105, %108 : vector<128x128xf32>
    %110 = math.exp %109 : vector<128x128xf32>
    %cst_72 = arith.constant dense<0.000000e+00> : vector<128xf32>
    %111 = vector.multi_reduction <add>, %110, %cst_72 [1] : vector<128x128xf32> to vector<128xf32>
    %112 = vector.shape_cast %111 : vector<128xf32> to vector<128x1xf32>
    %113 = tpu.reciprocal %112 {approx = true} : vector<128x1xf32> -> vector<128x1xf32>
    %114 = vector.broadcast %113 : vector<128x1xf32> to vector<128x128xf32>
    %115 = arith.mulf %110, %114 : vector<128x128xf32>
    %c0_73 = arith.constant 0 : index
    %c0_74 = arith.constant 0 : index
    %116 = vector.load %arg13[%c0_73, %c0_74] : memref<128x128xf32, #tpu.memory_space<vmem>>, vector<128x128xf32>
    tpu.vector_store %arg13[%c0_73, %c0_74], %115 {strides = array<i32>} : memref<128x128xf32, #tpu.memory_space<vmem>>, vector<128x128xf32>,
    return
  }
}

</mosaic_0001>

<llo_original>
// kernel: tpu_custom_call.1
$region0: #{tpu_custom_call.1}
  #allocation0 [shape = 'u32[]', space=smem, size = 0x4, offset = 0x4, fixed_abs, tag = 'smem constant byte address 0x4 - core index']
  #allocation1 [shape = 'u32[72,128]{1,0:T(1,128)}', space=vmem, size = 0x9000, scoped, tag = 'internal scratch']
  %s0 = inlined_call_operand.hbm [shape: bf16[2,128,128], index: 0, kind: input, shape index: {}]
  %s1 = inlined_call_operand.hbm [shape: bf16[2,128,128], index: 1, kind: input, shape index: {}]
  %s2 = inlined_call_operand.hbm [shape: bf16[2,128,128], index: 2, kind: input, shape index: {}]
  %s3 = inlined_call_operand.hbm [shape: bf16[2,128,128], index: 3, kind: input, shape index: {}]
  %s4 = inlined_call_operand.hbm [shape: bf16[2,128,128], index: 4, kind: input, shape index: {}]
  %s5 = inlined_call_operand.vmem [shape: f32[2,1,128], index: 5, kind: input, shape index: {}]
  %s6 = inlined_call_operand.hbm [shape: bf16[128,128], index: 6, kind: input, shape index: {}]
  %s7 = inlined_call_operand.hbm [shape: bf16[128,128], index: 7, kind: input, shape index: {}]
  %s8 = inlined_call_operand.vmem [shape: f32[1,128], index: 8, kind: input, shape index: {}]
  %s9 = inlined_call_operand.hbm [shape: bf16[384,128], index: 9, kind: input, shape index: {}]
  %s10 = inlined_call_operand.vmem [shape: f32[1,128], index: 10, kind: input, shape index: {}]
  %s11 = inlined_call_operand.hbm [shape: bf16[128,128], index: 11, kind: input, shape index: {}]
  %s12 = inlined_call_operand.vmem [shape: f32[1,128], index: 12, kind: input, shape index: {}]
  %s13 = inlined_call_operand.hbm [shape: f32[128,128], index: 13, kind: output, shape index: {}]
  %s14 = sld [smem:[#allocation0]]
  $region98: #{tpu_custom_call.1} parent=0
    _
  %s16 = ssub.s32 1, %s14
  %s17 = scalar_select 0, %s16, %s14
  $region1: #{tpu_custom_call.1} parent=0
    #allocation2 [shape = 'u8[65536]{0}', space=vmem, size = 0x10000, scoped, tag = 'input window, operand 0, single buffered']
    #allocation3 [shape = 's32[1]{0}', space=sflag, size = 0x4, scoped, tag = 'scoped memory for tpu_custom_call.1']
    #allocation4 [shape = 's32[1]{0}', space=sflag, size = 0x4, scoped, tag = 'scoped memory for tpu_custom_call.1']
    #allocation5 [shape = 'u8[65536]{0}', space=vmem, size = 0x10000, scoped, tag = 'input window, operand 1, single buffered']
    #allocation6 [shape = 's32[1]{0}', space=sflag, size = 0x4, scoped, tag = 'scoped memory for tpu_custom_call.1']
    #allocation7 [shape = 'u8[65536]{0}', space=vmem, size = 0x10000, scoped, tag = 'input window, operand 2, single buffered']
    #allocation8 [shape = 'u8[65536]{0}', space=vmem, size = 0x10000, scoped, tag = 'input window, operand 3, single buffered']
    #allocation9 [shape = 's32[1]{0}', space=sflag, size = 0x4, scoped, tag = 'scoped memory for tpu_custom_call.1']
    #allocation10 [shape = 'u8[65536]{0}', space=vmem, size = 0x10000, scoped, tag = 'input window, operand 4, single buffered']
    #allocation11 [shape = 'u8[32768]{0}', space=vmem, size = 0x8000, scoped, tag = 'input window, operand 6, single buffered']
    #allocation12 [shape = 's32[1]{0}', space=sflag, size = 0x4, scoped, tag = 'scoped memory for tpu_custom_call.1']
    #allocation13 [shape = 'u8[32768]{0}', space=vmem, size = 0x8000, scoped, tag = 'input window, operand 7, single buffered']
    #allocation14 [shape = 'u8[98304]{0}', space=vmem, size = 0x18000, scoped, tag = 'input window, operand 9, single buffered']
    #allocation15 [shape = 's32[1]{0}', space=sflag, size = 0x4, scoped, tag = 'scoped memory for tpu_custom_call.1']
    #allocation16 [shape = 'u8[32768]{0}', space=vmem, size = 0x8000, scoped, tag = 'input window, operand 11, single buffered']
    #allocation17 [shape = 'u8[65536]{0}', space=vmem, size = 0x10000, scoped, tag = 'output window, operand 0, single buffered']
    %18 = vsyncpa [#allocation3], 0
    %19 = vsyncpa [#allocation6], 0
    %20 = vsyncpa [#allocation9], 0
    %21 = vsyncpa [#allocation12], 0
    %22 = vsyncpa [#allocation15], 0
    %23 = vsyncpa [#allocation4], 0
    // Predicated region
    $region2: #{tpu_custom_call.1} parent=1 // pred_check
      _
    $region3: #{tpu_custom_call.1} parent=1 // pred_check_branch
      %25 = sbr.rel (0) target = $region5
    $region4: #{tpu_custom_call.1} parent=1 // pred_region
      %27 = vsyncadd [#allocation3], 0
      %s28 = sshll.u32 %s0, 4
      %s29 = int_to_ptr.hbm [resolvable:$true] %s28
      %s30 = sshll.u32 [#allocation2], 4
      %s31 = int_to_ptr.vmem [resolvable:$true] %s30
      %36 = dma.hbm_to_vmem [thread:$0]  %s29, 2048, %s31, [#allocation3], 64, 64, 4
    $region5: #{tpu_custom_call.1} parent=1 // pred_fallthru
      _
    // Predicated region
    $region6: #{tpu_custom_call.1} parent=1 // pred_check
      _
    $region7: #{tpu_custom_call.1} parent=1 // pred_check_branch
      %38 = sbr.rel (0) target = $region9
    $region8: #{tpu_custom_call.1} parent=1 // pred_region
      %40 = vsyncadd [#allocation6], 0
      %s41 = sshll.u32 %s1, 4
      %s42 = int_to_ptr.hbm [resolvable:$true] %s41
      %s43 = sshll.u32 [#allocation5], 4
      %s44 = int_to_ptr.vmem [resolvable:$true] %s43
      %49 = dma.hbm_to_vmem [thread:$0]  %s42, 2048, %s44, [#allocation6], 64, 64, 4
    $region9: #{tpu_custom_call.1} parent=1 // pred_fallthru
      _
    // Predicated region
    $region10: #{tpu_custom_call.1} parent=1 // pred_check
      _
    $region11: #{tpu_custom_call.1} parent=1 // pred_check_branch
      %51 = sbr.rel (0) target = $region13
    $region12: #{tpu_custom_call.1} parent=1 // pred_region
      %53 = vsyncadd [#allocation6], 0
      %s54 = sshll.u32 %s2, 4
      %s55 = int_to_ptr.hbm [resolvable:$true] %s54
      %s56 = sshll.u32 [#allocation7], 4
      %s57 = int_to_ptr.vmem [resolvable:$true] %s56
      %62 = dma.hbm_to_vmem [thread:$0]  %s55, 2048, %s57, [#allocation6], 64, 64, 4
    $region13: #{tpu_custom_call.1} parent=1 // pred_fallthru
      _
    // Predicated region
    $region14: #{tpu_custom_call.1} parent=1 // pred_check
      _
    $region15: #{tpu_custom_call.1} parent=1 // pred_check_branch
      %64 = sbr.rel (0) target = $region17
    $region16: #{tpu_custom_call.1} parent=1 // pred_region
      %66 = vsyncadd [#allocation9], 0
      %s67 = sshll.u32 %s3, 4
      %s68 = int_to_ptr.hbm [resolvable:$true] %s67
      %s69 = sshll.u32 [#allocation8], 4
      %s70 = int_to_ptr.vmem [resolvable:$true] %s69
      %75 = dma.hbm_to_vmem [thread:$0]  %s68, 2048, %s70, [#allocation9], 64, 64, 4
    $region17: #{tpu_custom_call.1} parent=1 // pred_fallthru
      _
    // Predicated region
    $region18: #{tpu_custom_call.1} parent=1 // pred_check
      _
    $region19: #{tpu_custom_call.1} parent=1 // pred_check_branch
      %77 = sbr.rel (0) target = $region21
    $region20: #{tpu_custom_call.1} parent=1 // pred_region
      %79 = vsyncadd [#allocation9], 0
      %s80 = sshll.u32 %s4, 4
      %s81 = int_to_ptr.hbm [resolvable:$true] %s80
      %s82 = sshll.u32 [#allocation10], 4
      %s83 = int_to_ptr.vmem [resolvable:$true] %s82
      %88 = dma.hbm_to_vmem [thread:$0]  %s81, 2048, %s83, [#allocation9], 64, 64, 4
    $region21: #{tpu_custom_call.1} parent=1 // pred_fallthru
      _
    // Predicated region
    $region22: #{tpu_custom_call.1} parent=1 // pred_check
      _
    $region23: #{tpu_custom_call.1} parent=1 // pred_check_branch
      %90 = sbr.rel (0) target = $region25
    $region24: #{tpu_custom_call.1} parent=1 // pred_region
      _
    $region25: #{tpu_custom_call.1} parent=1 // pred_fallthru
      _
    // Predicated region
    $region26: #{tpu_custom_call.1} parent=1 // pred_check
      _
    $region27: #{tpu_custom_call.1} parent=1 // pred_check_branch
      %92 = sbr.rel (0) target = $region29
    $region28: #{tpu_custom_call.1} parent=1 // pred_region
      %94 = vsyncadd [#allocation12], 0
      %s95 = sshll.u32 %s6, 4
      %s96 = int_to_ptr.hbm [resolvable:$true] %s95
      %s97 = sshll.u32 [#allocation11], 4
      %s98 = int_to_ptr.vmem [resolvable:$true] %s97
      %103 = dma.hbm_to_vmem [thread:$0]  %s96, 1024, %s98, [#allocation12], 64, 64, 4
    $region29: #{tpu_custom_call.1} parent=1 // pred_fallthru
      _
    // Predicated region
    $region30: #{tpu_custom_call.1} parent=1 // pred_check
      _
    $region31: #{tpu_custom_call.1} parent=1 // pred_check_branch
      %105 = sbr.rel (0) target = $region33
    $region32: #{tpu_custom_call.1} parent=1 // pred_region
      %107 = vsyncadd [#allocation12], 0
      %s108 = sshll.u32 %s7, 4
      %s109 = int_to_ptr.hbm [resolvable:$true] %s108
      %s110 = sshll.u32 [#allocation13], 4
      %s111 = int_to_ptr.vmem [resolvable:$true] %s110
      %116 = dma.hbm_to_vmem [thread:$0]  %s109, 1024, %s111, [#allocation12], 64, 64, 4
    $region33: #{tpu_custom_call.1} parent=1 // pred_fallthru
      _
    // Predicated region
    $region34: #{tpu_custom_call.1} parent=1 // pred_check
      _
    $region35: #{tpu_custom_call.1} parent=1 // pred_check_branch
      %118 = sbr.rel (0) target = $region37
    $region36: #{tpu_custom_call.1} parent=1 // pred_region
      _
    $region37: #{tpu_custom_call.1} parent=1 // pred_fallthru
      _
    // Predicated region
    $region38: #{tpu_custom_call.1} parent=1 // pred_check
      _
    $region39: #{tpu_custom_call.1} parent=1 // pred_check_branch
      %120 = sbr.rel (0) target = $region41
    $region40: #{tpu_custom_call.1} parent=1 // pred_region
      %122 = vsyncadd [#allocation15], 0
      %s123 = sshll.u32 %s9, 4
      %s124 = int_to_ptr.hbm [resolvable:$true] %s123
      %s125 = sshll.u32 [#allocation14], 4
      %s126 = int_to_ptr.vmem [resolvable:$true] %s125
      %131 = dma.hbm_to_vmem [thread:$0]  %s124, 3072, %s126, [#allocation15], 64, 64, 4
    $region41: #{tpu_custom_call.1} parent=1 // pred_fallthru
      _
    // Predicated region
    $region42: #{tpu_custom_call.1} parent=1 // pred_check
      _
    $region43: #{tpu_custom_call.1} parent=1 // pred_check_branch
      %133 = sbr.rel (0) target = $region45
    $region44: #{tpu_custom_call.1} parent=1 // pred_region
      _
    $region45: #{tpu_custom_call.1} parent=1 // pred_fallthru
      _
    // Predicated region
    $region46: #{tpu_custom_call.1} parent=1 // pred_check
      _
    $region47: #{tpu_custom_call.1} parent=1 // pred_check_branch
      %135 = sbr.rel (0) target = $region49
    $region48: #{tpu_custom_call.1} parent=1 // pred_region
      %137 = vsyncadd [#allocation15], 0
      %s138 = sshll.u32 %s11, 4
      %s139 = int_to_ptr.hbm [resolvable:$true] %s138
      %s140 = sshll.u32 [#allocation16], 4
      %s141 = int_to_ptr.vmem [resolvable:$true] %s140
      %146 = dma.hbm_to_vmem [thread:$0]  %s139, 1024, %s141, [#allocation15], 64, 64, 4
    $region49: #{tpu_custom_call.1} parent=1 // pred_fallthru
      _
    // Predicated region
    $region50: #{tpu_custom_call.1} parent=1 // pred_check
      _
    $region51: #{tpu_custom_call.1} parent=1 // pred_check_branch
      %148 = sbr.rel (0) target = $region53
    $region52: #{tpu_custom_call.1} parent=1 // pred_region
      _
    $region53: #{tpu_custom_call.1} parent=1 // pred_fallthru
      _
    // Predicated region
    $region54: #{tpu_custom_call.1} parent=1 // pred_check
      _
    $region55: #{tpu_custom_call.1} parent=1 // pred_check_branch
      %150 = sbr.rel (0) target = $region57
    $region56: #{tpu_custom_call.1} parent=1 // pred_region
      %152 = dma.done [#allocation3], 2048
    $region57: #{tpu_custom_call.1} parent=1 // pred_fallthru
      _
    // Predicated region
    $region58: #{tpu_custom_call.1} parent=1 // pred_check
      _
    $region59: #{tpu_custom_call.1} parent=1 // pred_check_branch
      %154 = sbr.rel (0) target = $region61
    $region60: #{tpu_custom_call.1} parent=1 // pred_region
      %156 = dma.done [#allocation6], 2048
    $region61: #{tpu_custom_call.1} parent=1 // pred_fallthru
      _
    // Predicated region
    $region62: #{tpu_custom_call.1} parent=1 // pred_check
      _
    $region63: #{tpu_custom_call.1} parent=1 // pred_check_branch
      %158 = sbr.rel (0) target = $region65
    $region64: #{tpu_custom_call.1} parent=1 // pred_region
      %160 = dma.done [#allocation6], 2048
    $region65: #{tpu_custom_call.1} parent=1 // pred_fallthru
      _
    // Predicated region
    $region66: #{tpu_custom_call.1} parent=1 // pred_check
      _
    $region67: #{tpu_custom_call.1} parent=1 // pred_check_branch
      %162 = sbr.rel (0) target = $region69
    $region68: #{tpu_custom_call.1} parent=1 // pred_region
      %164 = dma.done [#allocation9], 2048
    $region69: #{tpu_custom_call.1} parent=1 // pred_fallthru
      _
    // Predicated region
    $region70: #{tpu_custom_call.1} parent=1 // pred_check
      _
    $region71: #{tpu_custom_call.1} parent=1 // pred_check_branch
      %166 = sbr.rel (0) target = $region73
    $region72: #{tpu_custom_call.1} parent=1 // pred_region
      %168 = dma.done [#allocation9], 2048
    $region73: #{tpu_custom_call.1} parent=1 // pred_fallthru
      _
    // Predicated region
    $region74: #{tpu_custom_call.1} parent=1 // pred_check
      _
    $region75: #{tpu_custom_call.1} parent=1 // pred_check_branch
      %170 = sbr.rel (0) target = $region77
    $region76: #{tpu_custom_call.1} parent=1 // pred_region
      %172 = dma.done [#allocation12], 1024
    $region77: #{tpu_custom_call.1} parent=1 // pred_fallthru
      _
    // Predicated region
    $region78: #{tpu_custom_call.1} parent=1 // pred_check
      _
    $region79: #{tpu_custom_call.1} parent=1 // pred_check_branch
      %174 = sbr.rel (0) target = $region81
    $region80: #{tpu_custom_call.1} parent=1 // pred_region
      %176 = dma.done [#allocation12], 1024
    $region81: #{tpu_custom_call.1} parent=1 // pred_fallthru
      _
    // Predicated region
    $region82: #{tpu_custom_call.1} parent=1 // pred_check
      _
    $region83: #{tpu_custom_call.1} parent=1 // pred_check_branch
      %178 = sbr.rel (0) target = $region85
    $region84: #{tpu_custom_call.1} parent=1 // pred_region
      %180 = dma.done [#allocation15], 3072
    $region85: #{tpu_custom_call.1} parent=1 // pred_fallthru
      _
    // Predicated region
    $region86: #{tpu_custom_call.1} parent=1 // pred_check
      _
    $region87: #{tpu_custom_call.1} parent=1 // pred_check_branch
      %182 = sbr.rel (0) target = $region89
    $region88: #{tpu_custom_call.1} parent=1 // pred_region
      %184 = dma.done [#allocation15], 1024
    $region89: #{tpu_custom_call.1} parent=1 // pred_fallthru
      _
    %v185 = vlaneseq
    %v186 = vand.u32 %v185, 127
    %vm187 = vcmp.lt.s32.totalorder %v186, 16
    %vm188 = vcmp.lt.s32.totalorder %v186, 3
    %v189 = vld [vmem:[#allocation2] sm:$0xf]
    %v190 = vld [vmem:[#allocation2 + $0x4] sm:$0xf]
    %v191 = vld [vmem:[#allocation2 + $0x8] sm:$0xf]
    %v192 = vld [vmem:[#allocation2 + $0xc] sm:$0xf]
    %v193 = vld [vmem:[#allocation2 + $0x10] sm:$0xf]
    %v194 = vld [vmem:[#allocation2 + $0x14] sm:$0xf]
    %v195 = vld [vmem:[#allocation2 + $0x18] sm:$0xf]
    %v196 = vld [vmem:[#allocation2 + $0x1c] sm:$0xf]
    %v197 = vld [vmem:[#allocation2 + $0x20] sm:$0xf]
    %v198 = vld [vmem:[#allocation2 + $0x24] sm:$0xf]
    %v199 = vld [vmem:[#allocation2 + $0x28] sm:$0xf]
    %v200 = vld [vmem:[#allocation2 + $0x2c] sm:$0xf]
    %v201 = vld [vmem:[#allocation2 + $0x30] sm:$0xf]
    %v202 = vld [vmem:[#allocation2 + $0x34] sm:$0xf]
    %v203 = vld [vmem:[#allocation2 + $0x38] sm:$0xf]
    %v204 = vld [vmem:[#allocation2 + $0x3c] sm:$0xf]
    %v205 = vld [vmem:[#allocation5] sm:$0xf]
    %v206 = vld [vmem:[#allocation5 + $0x4] sm:$0xf]
    %v207 = vld [vmem:[#allocation5 + $0x8] sm:$0xf]
    %v208 = vld [vmem:[#allocation5 + $0xc] sm:$0xf]
    %v209 = vld [vmem:[#allocation5 + $0x10] sm:$0xf]
    %v210 = vld [vmem:[#allocation5 + $0x14] sm:$0xf]
    %v211 = vld [vmem:[#allocation5 + $0x18] sm:$0xf]
    %v212 = vld [vmem:[#allocation5 + $0x1c] sm:$0xf]
    %v213 = vld [vmem:[#allocation5 + $0x20] sm:$0xf]
    %v214 = vld [vmem:[#allocation5 + $0x24] sm:$0xf]
    %v215 = vld [vmem:[#allocation5 + $0x28] sm:$0xf]
    %v216 = vld [vmem:[#allocation5 + $0x2c] sm:$0xf]
    %v217 = vld [vmem:[#allocation5 + $0x30] sm:$0xf]
    %v218 = vld [vmem:[#allocation5 + $0x34] sm:$0xf]
    %v219 = vld [vmem:[#allocation5 + $0x38] sm:$0xf]
    %v220 = vld [vmem:[#allocation5 + $0x3c] sm:$0xf]
    %v221 = vld [vmem:[#allocation7] sm:$0xf]
    %v222 = vld [vmem:[#allocation7 + $0x4] sm:$0xf]
    %v223 = vld [vmem:[#allocation7 + $0x8] sm:$0xf]
    %v224 = vld [vmem:[#allocation7 + $0xc] sm:$0xf]
    %v225 = vld [vmem:[#allocation7 + $0x10] sm:$0xf]
    %v226 = vld [vmem:[#allocation7 + $0x14] sm:$0xf]
    %v227 = vld [vmem:[#allocation7 + $0x18] sm:$0xf]
    %v228 = vld [vmem:[#allocation7 + $0x1c] sm:$0xf]
    %v229 = vld [vmem:[#allocation7 + $0x20] sm:$0xf]
    %v230 = vld [vmem:[#allocation7 + $0x24] sm:$0xf]
    %v231 = vld [vmem:[#allocation7 + $0x28] sm:$0xf]
    %v232 = vld [vmem:[#allocation7 + $0x2c] sm:$0xf]
    %v233 = vld [vmem:[#allocation7 + $0x30] sm:$0xf]
    %v234 = vld [vmem:[#allocation7 + $0x34] sm:$0xf]
    %v235 = vld [vmem:[#allocation7 + $0x38] sm:$0xf]
    %v236 = vld [vmem:[#allocation7 + $0x3c] sm:$0xf]
    %v253 = vunpack.c.l.b16 %v205
    %v254 = vunpack.c.l.b16 %v206
    %v255 = vunpack.c.l.b16 %v207
    %v256 = vunpack.c.l.b16 %v208
    %v257 = vunpack.c.l.b16 %v209
    %v258 = vunpack.c.l.b16 %v210
    %v259 = vunpack.c.l.b16 %v211
    %v260 = vunpack.c.l.b16 %v212
    %v261 = vunpack.c.l.b16 %v213
    %v262 = vunpack.c.l.b16 %v214
    %v263 = vunpack.c.l.b16 %v215
    %v264 = vunpack.c.l.b16 %v216
    %v265 = vunpack.c.l.b16 %v217
    %v266 = vunpack.c.l.b16 %v218
    %v267 = vunpack.c.l.b16 %v219
    %v268 = vunpack.c.l.b16 %v220
    %v269 = vpack.c.b16 %v254, %v253
    %v270 = vpack.c.b16 %v256, %v255
    %v271 = vpack.c.b16 %v258, %v257
    %v272 = vpack.c.b16 %v260, %v259
    %v273 = vpack.c.b16 %v262, %v261
    %v274 = vpack.c.b16 %v264, %v263
    %v275 = vpack.c.b16 %v266, %v265
    %v276 = vpack.c.b16 %v268, %v267
    %v301 = vunpack.c.l.b16 %v221
    %v302 = vunpack.c.l.b16 %v222
    %v303 = vunpack.c.l.b16 %v223
    %v304 = vunpack.c.l.b16 %v224
    %v305 = vunpack.c.l.b16 %v225
    %v306 = vunpack.c.l.b16 %v226
    %v307 = vunpack.c.l.b16 %v227
    %v308 = vunpack.c.l.b16 %v228
    %v309 = vunpack.c.l.b16 %v229
    %v310 = vunpack.c.l.b16 %v230
    %v311 = vunpack.c.l.b16 %v231
    %v312 = vunpack.c.l.b16 %v232
    %v313 = vunpack.c.l.b16 %v233
    %v314 = vunpack.c.l.b16 %v234
    %v315 = vunpack.c.l.b16 %v235
    %v316 = vunpack.c.l.b16 %v236
    %v317 = vpack.c.b16 %v302, %v301
    %v318 = vpack.c.b16 %v304, %v303
    %v319 = vpack.c.b16 %v306, %v305
    %v320 = vpack.c.b16 %v308, %v307
    %v321 = vpack.c.b16 %v310, %v309
    %v322 = vpack.c.b16 %v312, %v311
    %v323 = vpack.c.b16 %v314, %v313
    %v324 = vpack.c.b16 %v316, %v315
    %333 = vmatpush.bf16.msra.mxu0 %v324
    %334 = vmatpush.bf16.msra.mxu0 %v323
    %335 = vmatpush.bf16.msra.mxu0 %v322
    %336 = vmatpush.bf16.msra.mxu0 %v321
    %337 = vmatpush.bf16.msra.mxu0 %v320
    %338 = vmatpush.bf16.msra.mxu0 %v319
    %339 = vmatpush.bf16.msra.mxu0 %v318
    %340 = vmatpush.bf16.msra.mxu0 %v317
    %341 = vmatmul.bf16.gmra.mxu0 %v269
    %v342 = vpop.f32.mrf.mxu0
    %v343 = vadd.f32 0.0, %v342
    %v344 = vpop.f32.mrf.mxu0
    %v345 = vadd.f32 0.0, %v344
    %346 = vmatmul.bf16.gmra.mxu0 %v270
    %v347 = vpop.f32.mrf.mxu0
    %v348 = vadd.f32 0.0, %v347
    %v349 = vpop.f32.mrf.mxu0
    %v350 = vadd.f32 0.0, %v349
    %351 = vmatmul.bf16.gmra.mxu0 %v271
    %v352 = vpop.f32.mrf.mxu0
    %v353 = vadd.f32 0.0, %v352
    %v354 = vpop.f32.mrf.mxu0
    %v355 = vadd.f32 0.0, %v354
    %356 = vmatmul.bf16.gmra.mxu0 %v272
    %v357 = vpop.f32.mrf.mxu0
    %v358 = vadd.f32 0.0, %v357
    %v359 = vpop.f32.mrf.mxu0
    %v360 = vadd.f32 0.0, %v359
    %361 = vmatmul.bf16.gmra.mxu0 %v273
    %v362 = vpop.f32.mrf.mxu0
    %v363 = vadd.f32 0.0, %v362
    %v364 = vpop.f32.mrf.mxu0
    %v365 = vadd.f32 0.0, %v364
    %366 = vmatmul.bf16.gmra.mxu0 %v274
    %v367 = vpop.f32.mrf.mxu0
    %v368 = vadd.f32 0.0, %v367
    %v369 = vpop.f32.mrf.mxu0
    %v370 = vadd.f32 0.0, %v369
    %371 = vmatmul.bf16.gmra.mxu0 %v275
    %v372 = vpop.f32.mrf.mxu0
    %v373 = vadd.f32 0.0, %v372
    %v374 = vpop.f32.mrf.mxu0
    %v375 = vadd.f32 0.0, %v374
    %376 = vmatmul.bf16.gmra.mxu0 %v276
    %v377 = vpop.f32.mrf.mxu0
    %v378 = vadd.f32 0.0, %v377
    %v379 = vpop.f32.mrf.mxu0
    %v380 = vadd.f32 0.0, %v379
    %381 = vdwg.mxu0
    %v382 = vpack.c.bf16 %v345, %v343
    %v383 = vpack.c.bf16 %v350, %v348
    %v384 = vpack.c.bf16 %v355, %v353
    %v385 = vpack.c.bf16 %v360, %v358
    %v386 = vpack.c.bf16 %v365, %v363
    %v387 = vpack.c.bf16 %v370, %v368
    %v388 = vpack.c.bf16 %v375, %v373
    %v389 = vpack.c.bf16 %v380, %v378
    %v406 = vunpack.c.l.b16 %v189
    %v407 = vunpack.c.l.b16 %v190
    %v408 = vunpack.c.l.b16 %v191
    %v409 = vunpack.c.l.b16 %v192
    %v410 = vunpack.c.l.b16 %v193
    %v411 = vunpack.c.l.b16 %v194
    %v412 = vunpack.c.l.b16 %v195
    %v413 = vunpack.c.l.b16 %v196
    %v414 = vunpack.c.l.b16 %v197
    %v415 = vunpack.c.l.b16 %v198
    %v416 = vunpack.c.l.b16 %v199
    %v417 = vunpack.c.l.b16 %v200
    %v418 = vunpack.c.l.b16 %v201
    %v419 = vunpack.c.l.b16 %v202
    %v420 = vunpack.c.l.b16 %v203
    %v421 = vunpack.c.l.b16 %v204
    %v422 = vpack.c.b16 %v407, %v406
    %v423 = vpack.c.b16 %v409, %v408
    %v424 = vpack.c.b16 %v411, %v410
    %v425 = vpack.c.b16 %v413, %v412
    %v426 = vpack.c.b16 %v415, %v414
    %v427 = vpack.c.b16 %v417, %v416
    %v428 = vpack.c.b16 %v419, %v418
    %v429 = vpack.c.b16 %v421, %v420
    %438 = vmatpush.bf16.msra.mxu0 %v389
    %439 = vmatpush.bf16.msra.mxu0 %v388
    %440 = vmatpush.bf16.msra.mxu0 %v387
    %441 = vmatpush.bf16.msra.mxu0 %v386
    %442 = vmatpush.bf16.msra.mxu0 %v385
    %443 = vmatpush.bf16.msra.mxu0 %v384
    %444 = vmatpush.bf16.msra.mxu0 %v383
    %445 = vmatpush.bf16.msra.mxu0 %v382
    %446 = vmatmul.bf16.gmra.mxu0 %v422
    %v447 = vpop.f32.mrf.mxu0
    %v448 = vadd.f32 0.0, %v447
    %v449 = vpop.f32.mrf.mxu0
    %v450 = vadd.f32 0.0, %v449
    %451 = vmatmul.bf16.gmra.mxu0 %v423
    %v452 = vpop.f32.mrf.mxu0
    %v453 = vadd.f32 0.0, %v452
    %v454 = vpop.f32.mrf.mxu0
    %v455 = vadd.f32 0.0, %v454
    %456 = vmatmul.bf16.gmra.mxu0 %v424
    %v457 = vpop.f32.mrf.mxu0
    %v458 = vadd.f32 0.0, %v457
    %v459 = vpop.f32.mrf.mxu0
    %v460 = vadd.f32 0.0, %v459
    %461 = vmatmul.bf16.gmra.mxu0 %v425
    %v462 = vpop.f32.mrf.mxu0
    %v463 = vadd.f32 0.0, %v462
    %v464 = vpop.f32.mrf.mxu0
    %v465 = vadd.f32 0.0, %v464
    %466 = vmatmul.bf16.gmra.mxu0 %v426
    %v467 = vpop.f32.mrf.mxu0
    %v468 = vadd.f32 0.0, %v467
    %v469 = vpop.f32.mrf.mxu0
    %v470 = vadd.f32 0.0, %v469
    %471 = vmatmul.bf16.gmra.mxu0 %v427
    %v472 = vpop.f32.mrf.mxu0
    %v473 = vadd.f32 0.0, %v472
    %v474 = vpop.f32.mrf.mxu0
    %v475 = vadd.f32 0.0, %v474
    %476 = vmatmul.bf16.gmra.mxu0 %v428
    %v477 = vpop.f32.mrf.mxu0
    %v478 = vadd.f32 0.0, %v477
    %v479 = vpop.f32.mrf.mxu0
    %v480 = vadd.f32 0.0, %v479
    %481 = vmatmul.bf16.gmra.mxu0 %v429
    %v482 = vpop.f32.mrf.mxu0
    %v483 = vadd.f32 0.0, %v482
    %v484 = vpop.f32.mrf.mxu0
    %v485 = vadd.f32 0.0, %v484
    %486 = vdwg.mxu0
    %v487 = vmax.f32 %v448, 0.0
    %v488 = vmax.f32 %v450, 0.0
    %v489 = vmax.f32 %v453, 0.0
    %v490 = vmax.f32 %v455, 0.0
    %v491 = vmax.f32 %v458, 0.0
    %v492 = vmax.f32 %v460, 0.0
    %v493 = vmax.f32 %v463, 0.0
    %v494 = vmax.f32 %v465, 0.0
    %v495 = vmax.f32 %v468, 0.0
    %v496 = vmax.f32 %v470, 0.0
    %v497 = vmax.f32 %v473, 0.0
    %v498 = vmax.f32 %v475, 0.0
    %v499 = vmax.f32 %v478, 0.0
    %v500 = vmax.f32 %v480, 0.0
    %v501 = vmax.f32 %v483, 0.0
    %v502 = vmax.f32 %v485, 0.0
    %v503 = vpack.c.bf16 %v488, %v487
    %v504 = vpack.c.bf16 %v490, %v489
    %v505 = vpack.c.bf16 %v492, %v491
    %v506 = vpack.c.bf16 %v494, %v493
    %v507 = vpack.c.bf16 %v496, %v495
    %v508 = vpack.c.bf16 %v498, %v497
    %v509 = vpack.c.bf16 %v500, %v499
    %v510 = vpack.c.bf16 %v502, %v501
    %v511 = vld [vmem:[#allocation8] sm:$0xf]
    %v512 = vld [vmem:[#allocation8 + $0x4] sm:$0xf]
    %v513 = vld [vmem:[#allocation8 + $0x8] sm:$0xf]
    %v514 = vld [vmem:[#allocation8 + $0xc] sm:$0xf]
    %v515 = vld [vmem:[#allocation8 + $0x10] sm:$0xf]
    %v516 = vld [vmem:[#allocation8 + $0x14] sm:$0xf]
    %v517 = vld [vmem:[#allocation8 + $0x18] sm:$0xf]
    %v518 = vld [vmem:[#allocation8 + $0x1c] sm:$0xf]
    %v519 = vld [vmem:[#allocation8 + $0x20] sm:$0xf]
    %v520 = vld [vmem:[#allocation8 + $0x24] sm:$0xf]
    %v521 = vld [vmem:[#allocation8 + $0x28] sm:$0xf]
    %v522 = vld [vmem:[#allocation8 + $0x2c] sm:$0xf]
    %v523 = vld [vmem:[#allocation8 + $0x30] sm:$0xf]
    %v524 = vld [vmem:[#allocation8 + $0x34] sm:$0xf]
    %v525 = vld [vmem:[#allocation8 + $0x38] sm:$0xf]
    %v526 = vld [vmem:[#allocation8 + $0x3c] sm:$0xf]
    %v543 = vunpack.c.l.b16 %v511
    %v544 = vunpack.c.l.b16 %v512
    %v545 = vunpack.c.l.b16 %v513
    %v546 = vunpack.c.l.b16 %v514
    %v547 = vunpack.c.l.b16 %v515
    %v548 = vunpack.c.l.b16 %v516
    %v549 = vunpack.c.l.b16 %v517
    %v550 = vunpack.c.l.b16 %v518
    %v551 = vunpack.c.l.b16 %v519
    %v552 = vunpack.c.l.b16 %v520
    %v553 = vunpack.c.l.b16 %v521
    %v554 = vunpack.c.l.b16 %v522
    %v555 = vunpack.c.l.b16 %v523
    %v556 = vunpack.c.l.b16 %v524
    %v557 = vunpack.c.l.b16 %v525
    %v558 = vunpack.c.l.b16 %v526
    %v559 = vpack.c.b16 %v544, %v543
    %v560 = vpack.c.b16 %v546, %v545
    %v561 = vpack.c.b16 %v548, %v547
    %v562 = vpack.c.b16 %v550, %v549
    %v563 = vpack.c.b16 %v552, %v551
    %v564 = vpack.c.b16 %v554, %v553
    %v565 = vpack.c.b16 %v556, %v555
    %v566 = vpack.c.b16 %v558, %v557
    %575 = vmatpush.bf16.msra.mxu0 %v566
    %576 = vmatpush.bf16.msra.mxu0 %v565
    %577 = vmatpush.bf16.msra.mxu0 %v564
    %578 = vmatpush.bf16.msra.mxu0 %v563
    %579 = vmatpush.bf16.msra.mxu0 %v562
    %580 = vmatpush.bf16.msra.mxu0 %v561
    %581 = vmatpush.bf16.msra.mxu0 %v560
    %582 = vmatpush.bf16.msra.mxu0 %v559
    %583 = vmatmul.bf16.gmra.mxu0 %v503
    %v584 = vpop.f32.mrf.mxu0
    %v585 = vadd.f32 0.0, %v584
    %v586 = vpop.f32.mrf.mxu0
    %v587 = vadd.f32 0.0, %v586
    %588 = vmatmul.bf16.gmra.mxu0 %v504
    %v589 = vpop.f32.mrf.mxu0
    %v590 = vadd.f32 0.0, %v589
    %v591 = vpop.f32.mrf.mxu0
    %v592 = vadd.f32 0.0, %v591
    %593 = vmatmul.bf16.gmra.mxu0 %v505
    %v594 = vpop.f32.mrf.mxu0
    %v595 = vadd.f32 0.0, %v594
    %v596 = vpop.f32.mrf.mxu0
    %v597 = vadd.f32 0.0, %v596
    %598 = vmatmul.bf16.gmra.mxu0 %v506
    %v599 = vpop.f32.mrf.mxu0
    %v600 = vadd.f32 0.0, %v599
    %v601 = vpop.f32.mrf.mxu0
    %v602 = vadd.f32 0.0, %v601
    %603 = vmatmul.bf16.gmra.mxu0 %v507
    %v604 = vpop.f32.mrf.mxu0
    %v605 = vadd.f32 0.0, %v604
    %v606 = vpop.f32.mrf.mxu0
    %v607 = vadd.f32 0.0, %v606
    %608 = vmatmul.bf16.gmra.mxu0 %v508
    %v609 = vpop.f32.mrf.mxu0
    %v610 = vadd.f32 0.0, %v609
    %v611 = vpop.f32.mrf.mxu0
    %v612 = vadd.f32 0.0, %v611
    %613 = vmatmul.bf16.gmra.mxu0 %v509
    %v614 = vpop.f32.mrf.mxu0
    %v615 = vadd.f32 0.0, %v614
    %v616 = vpop.f32.mrf.mxu0
    %v617 = vadd.f32 0.0, %v616
    %618 = vmatmul.bf16.gmra.mxu0 %v510
    %v619 = vpop.f32.mrf.mxu0
    %v620 = vadd.f32 0.0, %v619
    %v621 = vpop.f32.mrf.mxu0
    %v622 = vadd.f32 0.0, %v621
    %623 = vdwg.mxu0
    %v624 = vpack.c.bf16 %v587, %v585
    %v625 = vpack.c.bf16 %v592, %v590
    %v626 = vpack.c.bf16 %v597, %v595
    %v627 = vpack.c.bf16 %v602, %v600
    %v628 = vpack.c.bf16 %v607, %v605
    %v629 = vpack.c.bf16 %v612, %v610
    %v630 = vpack.c.bf16 %v617, %v615
    %v631 = vpack.c.bf16 %v622, %v620
    %632 = vmatpush.bf16.msra.mxu0 %v631
    %633 = vmatpush.bf16.msra.mxu0 %v630
    %634 = vmatpush.bf16.msra.mxu0 %v629
    %635 = vmatpush.bf16.msra.mxu0 %v628
    %636 = vmatpush.bf16.msra.mxu0 %v627
    %637 = vmatpush.bf16.msra.mxu0 %v626
    %638 = vmatpush.bf16.msra.mxu0 %v625
    %639 = vmatpush.bf16.msra.mxu0 %v624
    %640 = vmatmul.bf16.gmra.mxu0 %v422
    %v641 = vpop.f32.mrf.mxu0
    %v642 = vadd.f32 0.0, %v641
    %v643 = vpop.f32.mrf.mxu0
    %v644 = vadd.f32 0.0, %v643
    %645 = vmatmul.bf16.gmra.mxu0 %v423
    %v646 = vpop.f32.mrf.mxu0
    %v647 = vadd.f32 0.0, %v646
    %v648 = vpop.f32.mrf.mxu0
    %v649 = vadd.f32 0.0, %v648
    %650 = vmatmul.bf16.gmra.mxu0 %v424
    %v651 = vpop.f32.mrf.mxu0
    %v652 = vadd.f32 0.0, %v651
    %v653 = vpop.f32.mrf.mxu0
    %v654 = vadd.f32 0.0, %v653
    %655 = vmatmul.bf16.gmra.mxu0 %v425
    %v656 = vpop.f32.mrf.mxu0
    %v657 = vadd.f32 0.0, %v656
    %v658 = vpop.f32.mrf.mxu0
    %v659 = vadd.f32 0.0, %v658
    %660 = vmatmul.bf16.gmra.mxu0 %v426
    %v661 = vpop.f32.mrf.mxu0
    %v662 = vadd.f32 0.0, %v661
    %v663 = vpop.f32.mrf.mxu0
    %v664 = vadd.f32 0.0, %v663
    %665 = vmatmul.bf16.gmra.mxu0 %v427
    %v666 = vpop.f32.mrf.mxu0
    %v667 = vadd.f32 0.0, %v666
    %v668 = vpop.f32.mrf.mxu0
    %v669 = vadd.f32 0.0, %v668
    %670 = vmatmul.bf16.gmra.mxu0 %v428
    %v671 = vpop.f32.mrf.mxu0
    %v672 = vadd.f32 0.0, %v671
    %v673 = vpop.f32.mrf.mxu0
    %v674 = vadd.f32 0.0, %v673
    %675 = vmatmul.bf16.gmra.mxu0 %v429
    %v676 = vpop.f32.mrf.mxu0
    %v677 = vadd.f32 0.0, %v676
    %v678 = vpop.f32.mrf.mxu0
    %v679 = vadd.f32 0.0, %v678
    %680 = vdwg.mxu0
    %v681 = vsel %vm187, %v642, -1e+30
    %v682 = vsel %vm187, %v644, -1e+30
    %v683 = vsel %vm187, %v647, -1e+30
    %v684 = vsel %vm187, %v649, -1e+30
    %v685 = vsel %vm187, %v652, -1e+30
    %v686 = vsel %vm187, %v654, -1e+30
    %v687 = vsel %vm187, %v657, -1e+30
    %v688 = vsel %vm187, %v659, -1e+30
    %v689 = vsel %vm187, %v662, -1e+30
    %v690 = vsel %vm187, %v664, -1e+30
    %v691 = vsel %vm187, %v667, -1e+30
    %v692 = vsel %vm187, %v669, -1e+30
    %v693 = vsel %vm187, %v672, -1e+30
    %v694 = vsel %vm187, %v674, -1e+30
    %v695 = vsel %vm187, %v677, -1e+30
    %v696 = vsel %vm187, %v679, -1e+30
    %697 = vmax.xlane.f32.xlu0 %v681
    %v698 = vpop.xlane.xlu0 %697
    %699 = vmax.xlane.f32.xlu0 %v682
    %v700 = vpop.xlane.xlu0 %699
    %701 = vmax.xlane.f32.xlu0 %v683
    %v702 = vpop.xlane.xlu0 %701
    %703 = vmax.xlane.f32.xlu0 %v684
    %v704 = vpop.xlane.xlu0 %703
    %705 = vmax.xlane.f32.xlu0 %v685
    %v706 = vpop.xlane.xlu0 %705
    %707 = vmax.xlane.f32.xlu0 %v686
    %v708 = vpop.xlane.xlu0 %707
    %709 = vmax.xlane.f32.xlu0 %v687
    %v710 = vpop.xlane.xlu0 %709
    %711 = vmax.xlane.f32.xlu0 %v688
    %v712 = vpop.xlane.xlu0 %711
    %713 = vmax.xlane.f32.xlu0 %v689
    %v714 = vpop.xlane.xlu0 %713
    %715 = vmax.xlane.f32.xlu0 %v690
    %v716 = vpop.xlane.xlu0 %715
    %717 = vmax.xlane.f32.xlu0 %v691
    %v718 = vpop.xlane.xlu0 %717
    %719 = vmax.xlane.f32.xlu0 %v692
    %v720 = vpop.xlane.xlu0 %719
    %721 = vmax.xlane.f32.xlu0 %v693
    %v722 = vpop.xlane.xlu0 %721
    %723 = vmax.xlane.f32.xlu0 %v694
    %v724 = vpop.xlane.xlu0 %723
    %725 = vmax.xlane.f32.xlu0 %v695
    %v726 = vpop.xlane.xlu0 %725
    %727 = vmax.xlane.f32.xlu0 %v696
    %v728 = vpop.xlane.xlu0 %727
    %v729 = vsub.f32 %v681, %v698
    %v730 = vsub.f32 %v682, %v700
    %v731 = vsub.f32 %v683, %v702
    %v732 = vsub.f32 %v684, %v704
    %v733 = vsub.f32 %v685, %v706
    %v734 = vsub.f32 %v686, %v708
    %v735 = vsub.f32 %v687, %v710
    %v736 = vsub.f32 %v688, %v712
    %v737 = vsub.f32 %v689, %v714
    %v738 = vsub.f32 %v690, %v716
    %v739 = vsub.f32 %v691, %v718
    %v740 = vsub.f32 %v692, %v720
    %v741 = vsub.f32 %v693, %v722
    %v742 = vsub.f32 %v694, %v724
    %v743 = vsub.f32 %v695, %v726
    %v744 = vsub.f32 %v696, %v728
    %v745 = vmul.f32 %v729, 1.442695
    %v746 = vpow.pop %v745
    %v747 = vmul.f32 %v730, 1.442695
    %v748 = vpow.pop %v747
    %v749 = vmul.f32 %v731, 1.442695
    %v750 = vpow.pop %v749
    %v751 = vmul.f32 %v732, 1.442695
    %v752 = vpow.pop %v751
    %v753 = vmul.f32 %v733, 1.442695
    %v754 = vpow.pop %v753
    %v755 = vmul.f32 %v734, 1.442695
    %v756 = vpow.pop %v755
    %v757 = vmul.f32 %v735, 1.442695
    %v758 = vpow.pop %v757
    %v759 = vmul.f32 %v736, 1.442695
    %v760 = vpow.pop %v759
    %v761 = vmul.f32 %v737, 1.442695
    %v762 = vpow.pop %v761
    %v763 = vmul.f32 %v738, 1.442695
    %v764 = vpow.pop %v763
    %v765 = vmul.f32 %v739, 1.442695
    %v766 = vpow.pop %v765
    %v767 = vmul.f32 %v740, 1.442695
    %v768 = vpow.pop %v767
    %v769 = vmul.f32 %v741, 1.442695
    %v770 = vpow.pop %v769
    %v771 = vmul.f32 %v742, 1.442695
    %v772 = vpow.pop %v771
    %v773 = vmul.f32 %v743, 1.442695
    %v774 = vpow.pop %v773
    %v775 = vmul.f32 %v744, 1.442695
    %v776 = vpow.pop %v775
    %777 = vadd.xlane.f32.xlu0 %v746
    %v778 = vpop.xlane.xlu0 %777
    %779 = vadd.xlane.f32.xlu0 %v748
    %v780 = vpop.xlane.xlu0 %779
    %781 = vadd.xlane.f32.xlu0 %v750
    %v782 = vpop.xlane.xlu0 %781
    %783 = vadd.xlane.f32.xlu0 %v752
    %v784 = vpop.xlane.xlu0 %783
    %785 = vadd.xlane.f32.xlu0 %v754
    %v786 = vpop.xlane.xlu0 %785
    %787 = vadd.xlane.f32.xlu0 %v756
    %v788 = vpop.xlane.xlu0 %787
    %789 = vadd.xlane.f32.xlu0 %v758
    %v790 = vpop.xlane.xlu0 %789
    %791 = vadd.xlane.f32.xlu0 %v760
    %v792 = vpop.xlane.xlu0 %791
    %793 = vadd.xlane.f32.xlu0 %v762
    %v794 = vpop.xlane.xlu0 %793
    %795 = vadd.xlane.f32.xlu0 %v764
    %v796 = vpop.xlane.xlu0 %795
    %797 = vadd.xlane.f32.xlu0 %v766
    %v798 = vpop.xlane.xlu0 %797
    %799 = vadd.xlane.f32.xlu0 %v768
    %v800 = vpop.xlane.xlu0 %799
    %801 = vadd.xlane.f32.xlu0 %v770
    %v802 = vpop.xlane.xlu0 %801
    %803 = vadd.xlane.f32.xlu0 %v772
    %v804 = vpop.xlane.xlu0 %803
    %805 = vadd.xlane.f32.xlu0 %v774
    %v806 = vpop.xlane.xlu0 %805
    %807 = vadd.xlane.f32.xlu0 %v776
    %v808 = vpop.xlane.xlu0 %807
    %v809 = vlog2.pop %v778
    %v810 = vmul.f32 %v809, 0.6931472
    %v811 = vlog2.pop %v780
    %v812 = vmul.f32 %v811, 0.6931472
    %v813 = vlog2.pop %v782
    %v814 = vmul.f32 %v813, 0.6931472
    %v815 = vlog2.pop %v784
    %v816 = vmul.f32 %v815, 0.6931472
    %v817 = vlog2.pop %v786
    %v818 = vmul.f32 %v817, 0.6931472
    %v819 = vlog2.pop %v788
    %v820 = vmul.f32 %v819, 0.6931472
    %v821 = vlog2.pop %v790
    %v822 = vmul.f32 %v821, 0.6931472
    %v823 = vlog2.pop %v792
    %v824 = vmul.f32 %v823, 0.6931472
    %v825 = vlog2.pop %v794
    %v826 = vmul.f32 %v825, 0.6931472
    %v827 = vlog2.pop %v796
    %v828 = vmul.f32 %v827, 0.6931472
    %v829 = vlog2.pop %v798
    %v830 = vmul.f32 %v829, 0.6931472
    %v831 = vlog2.pop %v800
    %v832 = vmul.f32 %v831, 0.6931472
    %v833 = vlog2.pop %v802
    %v834 = vmul.f32 %v833, 0.6931472
    %v835 = vlog2.pop %v804
    %v836 = vmul.f32 %v835, 0.6931472
    %v837 = vlog2.pop %v806
    %v838 = vmul.f32 %v837, 0.6931472
    %v839 = vlog2.pop %v808
    %v840 = vmul.f32 %v839, 0.6931472
    %v841 = vsub.f32 %v729, %v810
    %v842 = vsub.f32 %v730, %v812
    %v843 = vsub.f32 %v731, %v814
    %v844 = vsub.f32 %v732, %v816
    %v845 = vsub.f32 %v733, %v818
    %v846 = vsub.f32 %v734, %v820
    %v847 = vsub.f32 %v735, %v822
    %v848 = vsub.f32 %v736, %v824
    %v849 = vsub.f32 %v737, %v826
    %v850 = vsub.f32 %v738, %v828
    %v851 = vsub.f32 %v739, %v830
    %v852 = vsub.f32 %v740, %v832
    %v853 = vsub.f32 %v741, %v834
    %v854 = vsub.f32 %v742, %v836
    %v855 = vsub.f32 %v743, %v838
    %v856 = vsub.f32 %v744, %v840
    %v857 = vsel %vm187, %v841, 0.0
    %v858 = vsel %vm187, %v842, 0.0
    %v859 = vsel %vm187, %v843, 0.0
    %v860 = vsel %vm187, %v844, 0.0
    %v861 = vsel %vm187, %v845, 0.0
    %v862 = vsel %vm187, %v846, 0.0
    %v863 = vsel %vm187, %v847, 0.0
    %v864 = vsel %vm187, %v848, 0.0
    %v865 = vsel %vm187, %v849, 0.0
    %v866 = vsel %vm187, %v850, 0.0
    %v867 = vsel %vm187, %v851, 0.0
    %v868 = vsel %vm187, %v852, 0.0
    %v869 = vsel %vm187, %v853, 0.0
    %v870 = vsel %vm187, %v854, 0.0
    %v871 = vsel %vm187, %v855, 0.0
    %v872 = vsel %vm187, %v856, 0.0
    %v873 = vpack.c.bf16 %v858, %v857
    %v874 = vpack.c.bf16 %v860, %v859
    %v875 = vpack.c.bf16 %v862, %v861
    %v876 = vpack.c.bf16 %v864, %v863
    %v877 = vpack.c.bf16 %v866, %v865
    %v878 = vpack.c.bf16 %v868, %v867
    %v879 = vpack.c.bf16 %v870, %v869
    %v880 = vpack.c.bf16 %v872, %v871
    %v881 = vld [vmem:[#allocation10] sm:$0xf]
    %v882 = vld [vmem:[#allocation10 + $0x4] sm:$0xf]
    %v883 = vld [vmem:[#allocation10 + $0x8] sm:$0xf]
    %v884 = vld [vmem:[#allocation10 + $0xc] sm:$0xf]
    %v885 = vld [vmem:[#allocation10 + $0x10] sm:$0xf]
    %v886 = vld [vmem:[#allocation10 + $0x14] sm:$0xf]
    %v887 = vld [vmem:[#allocation10 + $0x18] sm:$0xf]
    %v888 = vld [vmem:[#allocation10 + $0x1c] sm:$0xf]
    %v889 = vld [vmem:[#allocation10 + $0x20] sm:$0xf]
    %v890 = vld [vmem:[#allocation10 + $0x24] sm:$0xf]
    %v891 = vld [vmem:[#allocation10 + $0x28] sm:$0xf]
    %v892 = vld [vmem:[#allocation10 + $0x2c] sm:$0xf]
    %v893 = vld [vmem:[#allocation10 + $0x30] sm:$0xf]
    %v894 = vld [vmem:[#allocation10 + $0x34] sm:$0xf]
    %v895 = vld [vmem:[#allocation10 + $0x38] sm:$0xf]
    %v896 = vld [vmem:[#allocation10 + $0x3c] sm:$0xf]
    %v897 = vld [vmem:[%s5] sm:$0x1]
    %v899 = vperm.slane %v897, 0
    %v917 = vunpack.c.l.b16 %v881
    %v918 = vunpack.c.l.b16 %v882
    %v919 = vunpack.c.l.b16 %v883
    %v920 = vunpack.c.l.b16 %v884
    %v921 = vunpack.c.l.b16 %v885
    %v922 = vunpack.c.l.b16 %v886
    %v923 = vunpack.c.l.b16 %v887
    %v924 = vunpack.c.l.b16 %v888
    %v925 = vunpack.c.l.b16 %v889
    %v926 = vunpack.c.l.b16 %v890
    %v927 = vunpack.c.l.b16 %v891
    %v928 = vunpack.c.l.b16 %v892
    %v929 = vunpack.c.l.b16 %v893
    %v930 = vunpack.c.l.b16 %v894
    %v931 = vunpack.c.l.b16 %v895
    %v932 = vunpack.c.l.b16 %v896
    %v933 = vpack.c.b16 %v918, %v917
    %v934 = vpack.c.b16 %v920, %v919
    %v935 = vpack.c.b16 %v922, %v921
    %v936 = vpack.c.b16 %v924, %v923
    %v937 = vpack.c.b16 %v926, %v925
    %v938 = vpack.c.b16 %v928, %v927
    %v939 = vpack.c.b16 %v930, %v929
    %v940 = vpack.c.b16 %v932, %v931
    %949 = vmatpush.bf16.msra.mxu0 %v940
    %950 = vmatpush.bf16.msra.mxu0 %v939
    %951 = vmatpush.bf16.msra.mxu0 %v938
    %952 = vmatpush.bf16.msra.mxu0 %v937
    %953 = vmatpush.bf16.msra.mxu0 %v936
    %954 = vmatpush.bf16.msra.mxu0 %v935
    %955 = vmatpush.bf16.msra.mxu0 %v934
    %956 = vmatpush.bf16.msra.mxu0 %v933
    %957 = vmatmul.bf16.gmra.mxu0 %v873
    %v958 = vpop.f32.mrf.mxu0
    %v959 = vadd.f32 %v899, %v958
    %v960 = vpop.f32.mrf.mxu0
    %v961 = vadd.f32 %v899, %v960
    %962 = vmatmul.bf16.gmra.mxu0 %v874
    %v963 = vpop.f32.mrf.mxu0
    %v964 = vadd.f32 %v899, %v963
    %v965 = vpop.f32.mrf.mxu0
    %v966 = vadd.f32 %v899, %v965
    %967 = vmatmul.bf16.gmra.mxu0 %v875
    %v968 = vpop.f32.mrf.mxu0
    %v969 = vadd.f32 %v899, %v968
    %v970 = vpop.f32.mrf.mxu0
    %v971 = vadd.f32 %v899, %v970
    %972 = vmatmul.bf16.gmra.mxu0 %v876
    %v973 = vpop.f32.mrf.mxu0
    %v974 = vadd.f32 %v899, %v973
    %v975 = vpop.f32.mrf.mxu0
    %v976 = vadd.f32 %v899, %v975
    %977 = vmatmul.bf16.gmra.mxu0 %v877
    %v978 = vpop.f32.mrf.mxu0
    %v979 = vadd.f32 %v899, %v978
    %v980 = vpop.f32.mrf.mxu0
    %v981 = vadd.f32 %v899, %v980
    %982 = vmatmul.bf16.gmra.mxu0 %v878
    %v983 = vpop.f32.mrf.mxu0
    %v984 = vadd.f32 %v899, %v983
    %v985 = vpop.f32.mrf.mxu0
    %v986 = vadd.f32 %v899, %v985
    %987 = vmatmul.bf16.gmra.mxu0 %v879
    %v988 = vpop.f32.mrf.mxu0
    %v989 = vadd.f32 %v899, %v988
    %v990 = vpop.f32.mrf.mxu0
    %v991 = vadd.f32 %v899, %v990
    %992 = vmatmul.bf16.gmra.mxu0 %v880
    %v993 = vpop.f32.mrf.mxu0
    %v994 = vadd.f32 %v899, %v993
    %v995 = vpop.f32.mrf.mxu0
    %v996 = vadd.f32 %v899, %v995
    %997 = vdwg.mxu0
    %s998 = scalar_lea.vmem [#allocation2], 64
    %v999 = vld [vmem:[%s998] sm:$0xf]
    %v1000 = vld [vmem:[%s998 + $0x4] sm:$0xf]
    %v1001 = vld [vmem:[%s998 + $0x8] sm:$0xf]
    %v1002 = vld [vmem:[%s998 + $0xc] sm:$0xf]
    %v1003 = vld [vmem:[%s998 + $0x10] sm:$0xf]
    %v1004 = vld [vmem:[%s998 + $0x14] sm:$0xf]
    %v1005 = vld [vmem:[%s998 + $0x18] sm:$0xf]
    %v1006 = vld [vmem:[%s998 + $0x1c] sm:$0xf]
    %v1007 = vld [vmem:[%s998 + $0x20] sm:$0xf]
    %v1008 = vld [vmem:[%s998 + $0x24] sm:$0xf]
    %v1009 = vld [vmem:[%s998 + $0x28] sm:$0xf]
    %v1010 = vld [vmem:[%s998 + $0x2c] sm:$0xf]
    %v1011 = vld [vmem:[%s998 + $0x30] sm:$0xf]
    %v1012 = vld [vmem:[%s998 + $0x34] sm:$0xf]
    %v1013 = vld [vmem:[%s998 + $0x38] sm:$0xf]
    %v1014 = vld [vmem:[%s998 + $0x3c] sm:$0xf]
    %s1015 = scalar_lea.vmem [#allocation5], 64
    %v1016 = vld [vmem:[%s1015] sm:$0xf]
    %v1017 = vld [vmem:[%s1015 + $0x4] sm:$0xf]
    %v1018 = vld [vmem:[%s1015 + $0x8] sm:$0xf]
    %v1019 = vld [vmem:[%s1015 + $0xc] sm:$0xf]
    %v1020 = vld [vmem:[%s1015 + $0x10] sm:$0xf]
    %v1021 = vld [vmem:[%s1015 + $0x14] sm:$0xf]
    %v1022 = vld [vmem:[%s1015 + $0x18] sm:$0xf]
    %v1023 = vld [vmem:[%s1015 + $0x1c] sm:$0xf]
    %v1024 = vld [vmem:[%s1015 + $0x20] sm:$0xf]
    %v1025 = vld [vmem:[%s1015 + $0x24] sm:$0xf]
    %v1026 = vld [vmem:[%s1015 + $0x28] sm:$0xf]
    %v1027 = vld [vmem:[%s1015 + $0x2c] sm:$0xf]
    %v1028 = vld [vmem:[%s1015 + $0x30] sm:$0xf]
    %v1029 = vld [vmem:[%s1015 + $0x34] sm:$0xf]
    %v1030 = vld [vmem:[%s1015 + $0x38] sm:$0xf]
    %v1031 = vld [vmem:[%s1015 + $0x3c] sm:$0xf]
    %s1032 = scalar_lea.vmem [#allocation7], 64
    %v1033 = vld [vmem:[%s1032] sm:$0xf]
    %v1034 = vld [vmem:[%s1032 + $0x4] sm:$0xf]
    %v1035 = vld [vmem:[%s1032 + $0x8] sm:$0xf]
    %v1036 = vld [vmem:[%s1032 + $0xc] sm:$0xf]
    %v1037 = vld [vmem:[%s1032 + $0x10] sm:$0xf]
    %v1038 = vld [vmem:[%s1032 + $0x14] sm:$0xf]
    %v1039 = vld [vmem:[%s1032 + $0x18] sm:$0xf]
    %v1040 = vld [vmem:[%s1032 + $0x1c] sm:$0xf]
    %v1041 = vld [vmem:[%s1032 + $0x20] sm:$0xf]
    %v1042 = vld [vmem:[%s1032 + $0x24] sm:$0xf]
    %v1043 = vld [vmem:[%s1032 + $0x28] sm:$0xf]
    %v1044 = vld [vmem:[%s1032 + $0x2c] sm:$0xf]
    %v1045 = vld [vmem:[%s1032 + $0x30] sm:$0xf]
    %v1046 = vld [vmem:[%s1032 + $0x34] sm:$0xf]
    %v1047 = vld [vmem:[%s1032 + $0x38] sm:$0xf]
    %v1048 = vld [vmem:[%s1032 + $0x3c] sm:$0xf]
    %v1065 = vunpack.c.l.b16 %v1016
    %v1066 = vunpack.c.l.b16 %v1017
    %v1067 = vunpack.c.l.b16 %v1018
    %v1068 = vunpack.c.l.b16 %v1019
    %v1069 = vunpack.c.l.b16 %v1020
    %v1070 = vunpack.c.l.b16 %v1021
    %v1071 = vunpack.c.l.b16 %v1022
    %v1072 = vunpack.c.l.b16 %v1023
    %v1073 = vunpack.c.l.b16 %v1024
    %v1074 = vunpack.c.l.b16 %v1025
    %v1075 = vunpack.c.l.b16 %v1026
    %v1076 = vunpack.c.l.b16 %v1027
    %v1077 = vunpack.c.l.b16 %v1028
    %v1078 = vunpack.c.l.b16 %v1029
    %v1079 = vunpack.c.l.b16 %v1030
    %v1080 = vunpack.c.l.b16 %v1031
    %v1081 = vpack.c.b16 %v1066, %v1065
    %v1082 = vpack.c.b16 %v1068, %v1067
    %v1083 = vpack.c.b16 %v1070, %v1069
    %v1084 = vpack.c.b16 %v1072, %v1071
    %v1085 = vpack.c.b16 %v1074, %v1073
    %v1086 = vpack.c.b16 %v1076, %v1075
    %v1087 = vpack.c.b16 %v1078, %v1077
    %v1088 = vpack.c.b16 %v1080, %v1079
    %v1113 = vunpack.c.l.b16 %v1033
    %v1114 = vunpack.c.l.b16 %v1034
    %v1115 = vunpack.c.l.b16 %v1035
    %v1116 = vunpack.c.l.b16 %v1036
    %v1117 = vunpack.c.l.b16 %v1037
    %v1118 = vunpack.c.l.b16 %v1038
    %v1119 = vunpack.c.l.b16 %v1039
    %v1120 = vunpack.c.l.b16 %v1040
    %v1121 = vunpack.c.l.b16 %v1041
    %v1122 = vunpack.c.l.b16 %v1042
    %v1123 = vunpack.c.l.b16 %v1043
    %v1124 = vunpack.c.l.b16 %v1044
    %v1125 = vunpack.c.l.b16 %v1045
    %v1126 = vunpack.c.l.b16 %v1046
    %v1127 = vunpack.c.l.b16 %v1047
    %v1128 = vunpack.c.l.b16 %v1048
    %v1129 = vpack.c.b16 %v1114, %v1113
    %v1130 = vpack.c.b16 %v1116, %v1115
    %v1131 = vpack.c.b16 %v1118, %v1117
    %v1132 = vpack.c.b16 %v1120, %v1119
    %v1133 = vpack.c.b16 %v1122, %v1121
    %v1134 = vpack.c.b16 %v1124, %v1123
    %v1135 = vpack.c.b16 %v1126, %v1125
    %v1136 = vpack.c.b16 %v1128, %v1127
    %1145 = vmatpush.bf16.msra.mxu0 %v1136
    %1146 = vmatpush.bf16.msra.mxu0 %v1135
    %1147 = vmatpush.bf16.msra.mxu0 %v1134
    %1148 = vmatpush.bf16.msra.mxu0 %v1133
    %1149 = vmatpush.bf16.msra.mxu0 %v1132
    %1150 = vmatpush.bf16.msra.mxu0 %v1131
    %1151 = vmatpush.bf16.msra.mxu0 %v1130
    %1152 = vmatpush.bf16.msra.mxu0 %v1129
    %1153 = vmatmul.bf16.gmra.mxu0 %v1081
    %v1154 = vpop.f32.mrf.mxu0
    %v1155 = vadd.f32 0.0, %v1154
    %v1156 = vpop.f32.mrf.mxu0
    %v1157 = vadd.f32 0.0, %v1156
    %1158 = vmatmul.bf16.gmra.mxu0 %v1082
    %v1159 = vpop.f32.mrf.mxu0
    %v1160 = vadd.f32 0.0, %v1159
    %v1161 = vpop.f32.mrf.mxu0
    %v1162 = vadd.f32 0.0, %v1161
    %1163 = vmatmul.bf16.gmra.mxu0 %v1083
    %v1164 = vpop.f32.mrf.mxu0
    %v1165 = vadd.f32 0.0, %v1164
    %v1166 = vpop.f32.mrf.mxu0
    %v1167 = vadd.f32 0.0, %v1166
    %1168 = vmatmul.bf16.gmra.mxu0 %v1084
    %v1169 = vpop.f32.mrf.mxu0
    %v1170 = vadd.f32 0.0, %v1169
    %v1171 = vpop.f32.mrf.mxu0
    %v1172 = vadd.f32 0.0, %v1171
    %1173 = vmatmul.bf16.gmra.mxu0 %v1085
    %v1174 = vpop.f32.mrf.mxu0
    %v1175 = vadd.f32 0.0, %v1174
    %v1176 = vpop.f32.mrf.mxu0
    %v1177 = vadd.f32 0.0, %v1176
    %1178 = vmatmul.bf16.gmra.mxu0 %v1086
    %v1179 = vpop.f32.mrf.mxu0
    %v1180 = vadd.f32 0.0, %v1179
    %v1181 = vpop.f32.mrf.mxu0
    %v1182 = vadd.f32 0.0, %v1181
    %1183 = vmatmul.bf16.gmra.mxu0 %v1087
    %v1184 = vpop.f32.mrf.mxu0
    %v1185 = vadd.f32 0.0, %v1184
    %v1186 = vpop.f32.mrf.mxu0
    %v1187 = vadd.f32 0.0, %v1186
    %1188 = vmatmul.bf16.gmra.mxu0 %v1088
    %v1189 = vpop.f32.mrf.mxu0
    %v1190 = vadd.f32 0.0, %v1189
    %v1191 = vpop.f32.mrf.mxu0
    %v1192 = vadd.f32 0.0, %v1191
    %1193 = vdwg.mxu0
    %v1194 = vpack.c.bf16 %v1157, %v1155
    %v1195 = vpack.c.bf16 %v1162, %v1160
    %v1196 = vpack.c.bf16 %v1167, %v1165
    %v1197 = vpack.c.bf16 %v1172, %v1170
    %v1198 = vpack.c.bf16 %v1177, %v1175
    %v1199 = vpack.c.bf16 %v1182, %v1180
    %v1200 = vpack.c.bf16 %v1187, %v1185
    %v1201 = vpack.c.bf16 %v1192, %v1190
    %v1218 = vunpack.c.l.b16 %v999
    %v1219 = vunpack.c.l.b16 %v1000
    %v1220 = vunpack.c.l.b16 %v1001
    %v1221 = vunpack.c.l.b16 %v1002
    %v1222 = vunpack.c.l.b16 %v1003
    %v1223 = vunpack.c.l.b16 %v1004
    %v1224 = vunpack.c.l.b16 %v1005
    %v1225 = vunpack.c.l.b16 %v1006
    %v1226 = vunpack.c.l.b16 %v1007
    %v1227 = vunpack.c.l.b16 %v1008
    %v1228 = vunpack.c.l.b16 %v1009
    %v1229 = vunpack.c.l.b16 %v1010
    %v1230 = vunpack.c.l.b16 %v1011
    %v1231 = vunpack.c.l.b16 %v1012
    %v1232 = vunpack.c.l.b16 %v1013
    %v1233 = vunpack.c.l.b16 %v1014
    %v1234 = vpack.c.b16 %v1219, %v1218
    %v1235 = vpack.c.b16 %v1221, %v1220
    %v1236 = vpack.c.b16 %v1223, %v1222
    %v1237 = vpack.c.b16 %v1225, %v1224
    %v1238 = vpack.c.b16 %v1227, %v1226
    %v1239 = vpack.c.b16 %v1229, %v1228
    %v1240 = vpack.c.b16 %v1231, %v1230
    %v1241 = vpack.c.b16 %v1233, %v1232
    %1250 = vmatpush.bf16.msra.mxu0 %v1201
    %1251 = vmatpush.bf16.msra.mxu0 %v1200
    %1252 = vmatpush.bf16.msra.mxu0 %v1199
    %1253 = vmatpush.bf16.msra.mxu0 %v1198
    %1254 = vmatpush.bf16.msra.mxu0 %v1197
    %1255 = vmatpush.bf16.msra.mxu0 %v1196
    %1256 = vmatpush.bf16.msra.mxu0 %v1195
    %1257 = vmatpush.bf16.msra.mxu0 %v1194
    %1258 = vmatmul.bf16.gmra.mxu0 %v1234
    %v1259 = vpop.f32.mrf.mxu0
    %v1260 = vadd.f32 0.0, %v1259
    %v1261 = vpop.f32.mrf.mxu0
    %v1262 = vadd.f32 0.0, %v1261
    %1263 = vmatmul.bf16.gmra.mxu0 %v1235
    %v1264 = vpop.f32.mrf.mxu0
    %v1265 = vadd.f32 0.0, %v1264
    %v1266 = vpop.f32.mrf.mxu0
    %v1267 = vadd.f32 0.0, %v1266
    %1268 = vmatmul.bf16.gmra.mxu0 %v1236
    %v1269 = vpop.f32.mrf.mxu0
    %v1270 = vadd.f32 0.0, %v1269
    %v1271 = vpop.f32.mrf.mxu0
    %v1272 = vadd.f32 0.0, %v1271
    %1273 = vmatmul.bf16.gmra.mxu0 %v1237
    %v1274 = vpop.f32.mrf.mxu0
    %v1275 = vadd.f32 0.0, %v1274
    %v1276 = vpop.f32.mrf.mxu0
    %v1277 = vadd.f32 0.0, %v1276
    %1278 = vmatmul.bf16.gmra.mxu0 %v1238
    %v1279 = vpop.f32.mrf.mxu0
    %v1280 = vadd.f32 0.0, %v1279
    %v1281 = vpop.f32.mrf.mxu0
    %v1282 = vadd.f32 0.0, %v1281
    %1283 = vmatmul.bf16.gmra.mxu0 %v1239
    %v1284 = vpop.f32.mrf.mxu0
    %v1285 = vadd.f32 0.0, %v1284
    %v1286 = vpop.f32.mrf.mxu0
    %v1287 = vadd.f32 0.0, %v1286
    %1288 = vmatmul.bf16.gmra.mxu0 %v1240
    %v1289 = vpop.f32.mrf.mxu0
    %v1290 = vadd.f32 0.0, %v1289
    %v1291 = vpop.f32.mrf.mxu0
    %v1292 = vadd.f32 0.0, %v1291
    %1293 = vmatmul.bf16.gmra.mxu0 %v1241
    %v1294 = vpop.f32.mrf.mxu0
    %v1295 = vadd.f32 0.0, %v1294
    %v1296 = vpop.f32.mrf.mxu0
    %v1297 = vadd.f32 0.0, %v1296
    %1298 = vdwg.mxu0
    %v1299 = vmax.f32 %v1260, 0.0
    %v1300 = vmax.f32 %v1262, 0.0
    %v1301 = vmax.f32 %v1265, 0.0
    %v1302 = vmax.f32 %v1267, 0.0
    %v1303 = vmax.f32 %v1270, 0.0
    %v1304 = vmax.f32 %v1272, 0.0
    %v1305 = vmax.f32 %v1275, 0.0
    %v1306 = vmax.f32 %v1277, 0.0
    %v1307 = vmax.f32 %v1280, 0.0
    %v1308 = vmax.f32 %v1282, 0.0
    %v1309 = vmax.f32 %v1285, 0.0
    %v1310 = vmax.f32 %v1287, 0.0
    %v1311 = vmax.f32 %v1290, 0.0
    %v1312 = vmax.f32 %v1292, 0.0
    %v1313 = vmax.f32 %v1295, 0.0
    %v1314 = vmax.f32 %v1297, 0.0
    %v1315 = vpack.c.bf16 %v1300, %v1299
    %v1316 = vpack.c.bf16 %v1302, %v1301
    %v1317 = vpack.c.bf16 %v1304, %v1303
    %v1318 = vpack.c.bf16 %v1306, %v1305
    %v1319 = vpack.c.bf16 %v1308, %v1307
    %v1320 = vpack.c.bf16 %v1310, %v1309
    %v1321 = vpack.c.bf16 %v1312, %v1311
    %v1322 = vpack.c.bf16 %v1314, %v1313
    %s1323 = scalar_lea.vmem [#allocation8], 64
    %v1324 = vld [vmem:[%s1323] sm:$0xf]
    %v1325 = vld [vmem:[%s1323 + $0x4] sm:$0xf]
    %v1326 = vld [vmem:[%s1323 + $0x8] sm:$0xf]
    %v1327 = vld [vmem:[%s1323 + $0xc] sm:$0xf]
    %v1328 = vld [vmem:[%s1323 + $0x10] sm:$0xf]
    %v1329 = vld [vmem:[%s1323 + $0x14] sm:$0xf]
    %v1330 = vld [vmem:[%s1323 + $0x18] sm:$0xf]
    %v1331 = vld [vmem:[%s1323 + $0x1c] sm:$0xf]
    %v1332 = vld [vmem:[%s1323 + $0x20] sm:$0xf]
    %v1333 = vld [vmem:[%s1323 + $0x24] sm:$0xf]
    %v1334 = vld [vmem:[%s1323 + $0x28] sm:$0xf]
    %v1335 = vld [vmem:[%s1323 + $0x2c] sm:$0xf]
    %v1336 = vld [vmem:[%s1323 + $0x30] sm:$0xf]
    %v1337 = vld [vmem:[%s1323 + $0x34] sm:$0xf]
    %v1338 = vld [vmem:[%s1323 + $0x38] sm:$0xf]
    %v1339 = vld [vmem:[%s1323 + $0x3c] sm:$0xf]
    %v1356 = vunpack.c.l.b16 %v1324
    %v1357 = vunpack.c.l.b16 %v1325
    %v1358 = vunpack.c.l.b16 %v1326
    %v1359 = vunpack.c.l.b16 %v1327
    %v1360 = vunpack.c.l.b16 %v1328
    %v1361 = vunpack.c.l.b16 %v1329
    %v1362 = vunpack.c.l.b16 %v1330
    %v1363 = vunpack.c.l.b16 %v1331
    %v1364 = vunpack.c.l.b16 %v1332
    %v1365 = vunpack.c.l.b16 %v1333
    %v1366 = vunpack.c.l.b16 %v1334
    %v1367 = vunpack.c.l.b16 %v1335
    %v1368 = vunpack.c.l.b16 %v1336
    %v1369 = vunpack.c.l.b16 %v1337
    %v1370 = vunpack.c.l.b16 %v1338
    %v1371 = vunpack.c.l.b16 %v1339
    %v1372 = vpack.c.b16 %v1357, %v1356
    %v1373 = vpack.c.b16 %v1359, %v1358
    %v1374 = vpack.c.b16 %v1361, %v1360
    %v1375 = vpack.c.b16 %v1363, %v1362
    %v1376 = vpack.c.b16 %v1365, %v1364
    %v1377 = vpack.c.b16 %v1367, %v1366
    %v1378 = vpack.c.b16 %v1369, %v1368
    %v1379 = vpack.c.b16 %v1371, %v1370
    %1388 = vmatpush.bf16.msra.mxu0 %v1379
    %1389 = vmatpush.bf16.msra.mxu0 %v1378
    %1390 = vmatpush.bf16.msra.mxu0 %v1377
    %1391 = vmatpush.bf16.msra.mxu0 %v1376
    %1392 = vmatpush.bf16.msra.mxu0 %v1375
    %1393 = vmatpush.bf16.msra.mxu0 %v1374
    %1394 = vmatpush.bf16.msra.mxu0 %v1373
    %1395 = vmatpush.bf16.msra.mxu0 %v1372
    %1396 = vmatmul.bf16.gmra.mxu0 %v1315
    %v1397 = vpop.f32.mrf.mxu0
    %v1398 = vadd.f32 0.0, %v1397
    %v1399 = vpop.f32.mrf.mxu0
    %v1400 = vadd.f32 0.0, %v1399
    %1401 = vmatmul.bf16.gmra.mxu0 %v1316
    %v1402 = vpop.f32.mrf.mxu0
    %v1403 = vadd.f32 0.0, %v1402
    %v1404 = vpop.f32.mrf.mxu0
    %v1405 = vadd.f32 0.0, %v1404
    %1406 = vmatmul.bf16.gmra.mxu0 %v1317
    %v1407 = vpop.f32.mrf.mxu0
    %v1408 = vadd.f32 0.0, %v1407
    %v1409 = vpop.f32.mrf.mxu0
    %v1410 = vadd.f32 0.0, %v1409
    %1411 = vmatmul.bf16.gmra.mxu0 %v1318
    %v1412 = vpop.f32.mrf.mxu0
    %v1413 = vadd.f32 0.0, %v1412
    %v1414 = vpop.f32.mrf.mxu0
    %v1415 = vadd.f32 0.0, %v1414
    %1416 = vmatmul.bf16.gmra.mxu0 %v1319
    %v1417 = vpop.f32.mrf.mxu0
    %v1418 = vadd.f32 0.0, %v1417
    %v1419 = vpop.f32.mrf.mxu0
    %v1420 = vadd.f32 0.0, %v1419
    %1421 = vmatmul.bf16.gmra.mxu0 %v1320
    %v1422 = vpop.f32.mrf.mxu0
    %v1423 = vadd.f32 0.0, %v1422
    %v1424 = vpop.f32.mrf.mxu0
    %v1425 = vadd.f32 0.0, %v1424
    %1426 = vmatmul.bf16.gmra.mxu0 %v1321
    %v1427 = vpop.f32.mrf.mxu0
    %v1428 = vadd.f32 0.0, %v1427
    %v1429 = vpop.f32.mrf.mxu0
    %v1430 = vadd.f32 0.0, %v1429
    %1431 = vmatmul.bf16.gmra.mxu0 %v1322
    %v1432 = vpop.f32.mrf.mxu0
    %v1433 = vadd.f32 0.0, %v1432
    %v1434 = vpop.f32.mrf.mxu0
    %v1435 = vadd.f32 0.0, %v1434
    %1436 = vdwg.mxu0
    %v1437 = vpack.c.bf16 %v1400, %v1398
    %v1438 = vpack.c.bf16 %v1405, %v1403
    %v1439 = vpack.c.bf16 %v1410, %v1408
    %v1440 = vpack.c.bf16 %v1415, %v1413
    %v1441 = vpack.c.bf16 %v1420, %v1418
    %v1442 = vpack.c.bf16 %v1425, %v1423
    %v1443 = vpack.c.bf16 %v1430, %v1428
    %v1444 = vpack.c.bf16 %v1435, %v1433
    %1445 = vmatpush.bf16.msra.mxu0 %v1444
    %1446 = vmatpush.bf16.msra.mxu0 %v1443
    %1447 = vmatpush.bf16.msra.mxu0 %v1442
    %1448 = vmatpush.bf16.msra.mxu0 %v1441
    %1449 = vmatpush.bf16.msra.mxu0 %v1440
    %1450 = vmatpush.bf16.msra.mxu0 %v1439
    %1451 = vmatpush.bf16.msra.mxu0 %v1438
    %1452 = vmatpush.bf16.msra.mxu0 %v1437
    %1453 = vmatmul.bf16.gmra.mxu0 %v1234
    %v1454 = vpop.f32.mrf.mxu0
    %v1455 = vadd.f32 0.0, %v1454
    %v1456 = vpop.f32.mrf.mxu0
    %v1457 = vadd.f32 0.0, %v1456
    %1458 = vmatmul.bf16.gmra.mxu0 %v1235
    %v1459 = vpop.f32.mrf.mxu0
    %v1460 = vadd.f32 0.0, %v1459
    %v1461 = vpop.f32.mrf.mxu0
    %v1462 = vadd.f32 0.0, %v1461
    %1463 = vmatmul.bf16.gmra.mxu0 %v1236
    %v1464 = vpop.f32.mrf.mxu0
    %v1465 = vadd.f32 0.0, %v1464
    %v1466 = vpop.f32.mrf.mxu0
    %v1467 = vadd.f32 0.0, %v1466
    %1468 = vmatmul.bf16.gmra.mxu0 %v1237
    %v1469 = vpop.f32.mrf.mxu0
    %v1470 = vadd.f32 0.0, %v1469
    %v1471 = vpop.f32.mrf.mxu0
    %v1472 = vadd.f32 0.0, %v1471
    %1473 = vmatmul.bf16.gmra.mxu0 %v1238
    %v1474 = vpop.f32.mrf.mxu0
    %v1475 = vadd.f32 0.0, %v1474
    %v1476 = vpop.f32.mrf.mxu0
    %v1477 = vadd.f32 0.0, %v1476
    %1478 = vmatmul.bf16.gmra.mxu0 %v1239
    %v1479 = vpop.f32.mrf.mxu0
    %v1480 = vadd.f32 0.0, %v1479
    %v1481 = vpop.f32.mrf.mxu0
    %v1482 = vadd.f32 0.0, %v1481
    %1483 = vmatmul.bf16.gmra.mxu0 %v1240
    %v1484 = vpop.f32.mrf.mxu0
    %v1485 = vadd.f32 0.0, %v1484
    %v1486 = vpop.f32.mrf.mxu0
    %v1487 = vadd.f32 0.0, %v1486
    %1488 = vmatmul.bf16.gmra.mxu0 %v1241
    %v1489 = vpop.f32.mrf.mxu0
    %v1490 = vadd.f32 0.0, %v1489
    %v1491 = vpop.f32.mrf.mxu0
    %v1492 = vadd.f32 0.0, %v1491
    %1493 = vdwg.mxu0
    %v1494 = vsel %vm187, %v1455, -1e+30
    %v1495 = vsel %vm187, %v1457, -1e+30
    %v1496 = vsel %vm187, %v1460, -1e+30
    %v1497 = vsel %vm187, %v1462, -1e+30
    %v1498 = vsel %vm187, %v1465, -1e+30
    %v1499 = vsel %vm187, %v1467, -1e+30
    %v1500 = vsel %vm187, %v1470, -1e+30
    %v1501 = vsel %vm187, %v1472, -1e+30
    %v1502 = vsel %vm187, %v1475, -1e+30
    %v1503 = vsel %vm187, %v1477, -1e+30
    %v1504 = vsel %vm187, %v1480, -1e+30
    %v1505 = vsel %vm187, %v1482, -1e+30
    %v1506 = vsel %vm187, %v1485, -1e+30
    %v1507 = vsel %vm187, %v1487, -1e+30
    %v1508 = vsel %vm187, %v1490, -1e+30
    %v1509 = vsel %vm187, %v1492, -1e+30
    %1510 = vmax.xlane.f32.xlu0 %v1494
    %v1511 = vpop.xlane.xlu0 %1510
    %1512 = vmax.xlane.f32.xlu0 %v1495
    %v1513 = vpop.xlane.xlu0 %1512
    %1514 = vmax.xlane.f32.xlu0 %v1496
    %v1515 = vpop.xlane.xlu0 %1514
    %1516 = vmax.xlane.f32.xlu0 %v1497
    %v1517 = vpop.xlane.xlu0 %1516
    %1518 = vmax.xlane.f32.xlu0 %v1498
    %v1519 = vpop.xlane.xlu0 %1518
    %1520 = vmax.xlane.f32.xlu0 %v1499
    %v1521 = vpop.xlane.xlu0 %1520
    %1522 = vmax.xlane.f32.xlu0 %v1500
    %v1523 = vpop.xlane.xlu0 %1522
    %1524 = vmax.xlane.f32.xlu0 %v1501
    %v1525 = vpop.xlane.xlu0 %1524
    %1526 = vmax.xlane.f32.xlu0 %v1502
    %v1527 = vpop.xlane.xlu0 %1526
    %1528 = vmax.xlane.f32.xlu0 %v1503
    %v1529 = vpop.xlane.xlu0 %1528
    %1530 = vmax.xlane.f32.xlu0 %v1504
    %v1531 = vpop.xlane.xlu0 %1530
    %1532 = vmax.xlane.f32.xlu0 %v1505
    %v1533 = vpop.xlane.xlu0 %1532
    %1534 = vmax.xlane.f32.xlu0 %v1506
    %v1535 = vpop.xlane.xlu0 %1534
    %1536 = vmax.xlane.f32.xlu0 %v1507
    %v1537 = vpop.xlane.xlu0 %1536
    %1538 = vmax.xlane.f32.xlu0 %v1508
    %v1539 = vpop.xlane.xlu0 %1538
    %1540 = vmax.xlane.f32.xlu0 %v1509
    %v1541 = vpop.xlane.xlu0 %1540
    %v1542 = vsub.f32 %v1494, %v1511
    %v1543 = vsub.f32 %v1495, %v1513
    %v1544 = vsub.f32 %v1496, %v1515
    %v1545 = vsub.f32 %v1497, %v1517
    %v1546 = vsub.f32 %v1498, %v1519
    %v1547 = vsub.f32 %v1499, %v1521
    %v1548 = vsub.f32 %v1500, %v1523
    %v1549 = vsub.f32 %v1501, %v1525
    %v1550 = vsub.f32 %v1502, %v1527
    %v1551 = vsub.f32 %v1503, %v1529
    %v1552 = vsub.f32 %v1504, %v1531
    %v1553 = vsub.f32 %v1505, %v1533
    %v1554 = vsub.f32 %v1506, %v1535
    %v1555 = vsub.f32 %v1507, %v1537
    %v1556 = vsub.f32 %v1508, %v1539
    %v1557 = vsub.f32 %v1509, %v1541
    %v1558 = vmul.f32 %v1542, 1.442695
    %v1559 = vpow.pop %v1558
    %v1560 = vmul.f32 %v1543, 1.442695
    %v1561 = vpow.pop %v1560
    %v1562 = vmul.f32 %v1544, 1.442695
    %v1563 = vpow.pop %v1562
    %v1564 = vmul.f32 %v1545, 1.442695
    %v1565 = vpow.pop %v1564
    %v1566 = vmul.f32 %v1546, 1.442695
    %v1567 = vpow.pop %v1566
    %v1568 = vmul.f32 %v1547, 1.442695
    %v1569 = vpow.pop %v1568
    %v1570 = vmul.f32 %v1548, 1.442695
    %v1571 = vpow.pop %v1570
    %v1572 = vmul.f32 %v1549, 1.442695
    %v1573 = vpow.pop %v1572
    %v1574 = vmul.f32 %v1550, 1.442695
    %v1575 = vpow.pop %v1574
    %v1576 = vmul.f32 %v1551, 1.442695
    %v1577 = vpow.pop %v1576
    %v1578 = vmul.f32 %v1552, 1.442695
    %v1579 = vpow.pop %v1578
    %v1580 = vmul.f32 %v1553, 1.442695
    %v1581 = vpow.pop %v1580
    %v1582 = vmul.f32 %v1554, 1.442695
    %v1583 = vpow.pop %v1582
    %v1584 = vmul.f32 %v1555, 1.442695
    %v1585 = vpow.pop %v1584
    %v1586 = vmul.f32 %v1556, 1.442695
    %v1587 = vpow.pop %v1586
    %v1588 = vmul.f32 %v1557, 1.442695
    %v1589 = vpow.pop %v1588
    %1590 = vadd.xlane.f32.xlu0 %v1559
    %v1591 = vpop.xlane.xlu0 %1590
    %1592 = vadd.xlane.f32.xlu0 %v1561
    %v1593 = vpop.xlane.xlu0 %1592
    %1594 = vadd.xlane.f32.xlu0 %v1563
    %v1595 = vpop.xlane.xlu0 %1594
    %1596 = vadd.xlane.f32.xlu0 %v1565
    %v1597 = vpop.xlane.xlu0 %1596
    %1598 = vadd.xlane.f32.xlu0 %v1567
    %v1599 = vpop.xlane.xlu0 %1598
    %1600 = vadd.xlane.f32.xlu0 %v1569
    %v1601 = vpop.xlane.xlu0 %1600
    %1602 = vadd.xlane.f32.xlu0 %v1571
    %v1603 = vpop.xlane.xlu0 %1602
    %1604 = vadd.xlane.f32.xlu0 %v1573
    %v1605 = vpop.xlane.xlu0 %1604
    %1606 = vadd.xlane.f32.xlu0 %v1575
    %v1607 = vpop.xlane.xlu0 %1606
    %1608 = vadd.xlane.f32.xlu0 %v1577
    %v1609 = vpop.xlane.xlu0 %1608
    %1610 = vadd.xlane.f32.xlu0 %v1579
    %v1611 = vpop.xlane.xlu0 %1610
    %1612 = vadd.xlane.f32.xlu0 %v1581
    %v1613 = vpop.xlane.xlu0 %1612
    %1614 = vadd.xlane.f32.xlu0 %v1583
    %v1615 = vpop.xlane.xlu0 %1614
    %1616 = vadd.xlane.f32.xlu0 %v1585
    %v1617 = vpop.xlane.xlu0 %1616
    %1618 = vadd.xlane.f32.xlu0 %v1587
    %v1619 = vpop.xlane.xlu0 %1618
    %1620 = vadd.xlane.f32.xlu0 %v1589
    %v1621 = vpop.xlane.xlu0 %1620
    %v1622 = vlog2.pop %v1591
    %v1623 = vmul.f32 %v1622, 0.6931472
    %v1624 = vlog2.pop %v1593
    %v1625 = vmul.f32 %v1624, 0.6931472
    %v1626 = vlog2.pop %v1595
    %v1627 = vmul.f32 %v1626, 0.6931472
    %v1628 = vlog2.pop %v1597
    %v1629 = vmul.f32 %v1628, 0.6931472
    %v1630 = vlog2.pop %v1599
    %v1631 = vmul.f32 %v1630, 0.6931472
    %v1632 = vlog2.pop %v1601
    %v1633 = vmul.f32 %v1632, 0.6931472
    %v1634 = vlog2.pop %v1603
    %v1635 = vmul.f32 %v1634, 0.6931472
    %v1636 = vlog2.pop %v1605
    %v1637 = vmul.f32 %v1636, 0.6931472
    %v1638 = vlog2.pop %v1607
    %v1639 = vmul.f32 %v1638, 0.6931472
    %v1640 = vlog2.pop %v1609
    %v1641 = vmul.f32 %v1640, 0.6931472
    %v1642 = vlog2.pop %v1611
    %v1643 = vmul.f32 %v1642, 0.6931472
    %v1644 = vlog2.pop %v1613
    %v1645 = vmul.f32 %v1644, 0.6931472
    %v1646 = vlog2.pop %v1615
    %v1647 = vmul.f32 %v1646, 0.6931472
    %v1648 = vlog2.pop %v1617
    %v1649 = vmul.f32 %v1648, 0.6931472
    %v1650 = vlog2.pop %v1619
    %v1651 = vmul.f32 %v1650, 0.6931472
    %v1652 = vlog2.pop %v1621
    %v1653 = vmul.f32 %v1652, 0.6931472
    %v1654 = vsub.f32 %v1542, %v1623
    %v1655 = vsub.f32 %v1543, %v1625
    %v1656 = vsub.f32 %v1544, %v1627
    %v1657 = vsub.f32 %v1545, %v1629
    %v1658 = vsub.f32 %v1546, %v1631
    %v1659 = vsub.f32 %v1547, %v1633
    %v1660 = vsub.f32 %v1548, %v1635
    %v1661 = vsub.f32 %v1549, %v1637
    %v1662 = vsub.f32 %v1550, %v1639
    %v1663 = vsub.f32 %v1551, %v1641
    %v1664 = vsub.f32 %v1552, %v1643
    %v1665 = vsub.f32 %v1553, %v1645
    %v1666 = vsub.f32 %v1554, %v1647
    %v1667 = vsub.f32 %v1555, %v1649
    %v1668 = vsub.f32 %v1556, %v1651
    %v1669 = vsub.f32 %v1557, %v1653
    %v1670 = vsel %vm187, %v1654, 0.0
    %v1671 = vsel %vm187, %v1655, 0.0
    %v1672 = vsel %vm187, %v1656, 0.0
    %v1673 = vsel %vm187, %v1657, 0.0
    %v1674 = vsel %vm187, %v1658, 0.0
    %v1675 = vsel %vm187, %v1659, 0.0
    %v1676 = vsel %vm187, %v1660, 0.0
    %v1677 = vsel %vm187, %v1661, 0.0
    %v1678 = vsel %vm187, %v1662, 0.0
    %v1679 = vsel %vm187, %v1663, 0.0
    %v1680 = vsel %vm187, %v1664, 0.0
    %v1681 = vsel %vm187, %v1665, 0.0
    %v1682 = vsel %vm187, %v1666, 0.0
    %v1683 = vsel %vm187, %v1667, 0.0
    %v1684 = vsel %vm187, %v1668, 0.0
    %v1685 = vsel %vm187, %v1669, 0.0
    %v1686 = vpack.c.bf16 %v1671, %v1670
    %v1687 = vpack.c.bf16 %v1673, %v1672
    %v1688 = vpack.c.bf16 %v1675, %v1674
    %v1689 = vpack.c.bf16 %v1677, %v1676
    %v1690 = vpack.c.bf16 %v1679, %v1678
    %v1691 = vpack.c.bf16 %v1681, %v1680
    %v1692 = vpack.c.bf16 %v1683, %v1682
    %v1693 = vpack.c.bf16 %v1685, %v1684
    %s1694 = scalar_lea.vmem [#allocation10], 64
    %v1695 = vld [vmem:[%s1694] sm:$0xf]
    %v1696 = vld [vmem:[%s1694 + $0x4] sm:$0xf]
    %v1697 = vld [vmem:[%s1694 + $0x8] sm:$0xf]
    %v1698 = vld [vmem:[%s1694 + $0xc] sm:$0xf]
    %v1699 = vld [vmem:[%s1694 + $0x10] sm:$0xf]
    %v1700 = vld [vmem:[%s1694 + $0x14] sm:$0xf]
    %v1701 = vld [vmem:[%s1694 + $0x18] sm:$0xf]
    %v1702 = vld [vmem:[%s1694 + $0x1c] sm:$0xf]
    %v1703 = vld [vmem:[%s1694 + $0x20] sm:$0xf]
    %v1704 = vld [vmem:[%s1694 + $0x24] sm:$0xf]
    %v1705 = vld [vmem:[%s1694 + $0x28] sm:$0xf]
    %v1706 = vld [vmem:[%s1694 + $0x2c] sm:$0xf]
    %v1707 = vld [vmem:[%s1694 + $0x30] sm:$0xf]
    %v1708 = vld [vmem:[%s1694 + $0x34] sm:$0xf]
    %v1709 = vld [vmem:[%s1694 + $0x38] sm:$0xf]
    %v1710 = vld [vmem:[%s1694 + $0x3c] sm:$0xf]
    %s1711 = scalar_lea.vmem %s5, 1
    %v1712 = vld [vmem:[%s1711] sm:$0x1]
    %v1714 = vperm.slane %v1712, 0
    %v1732 = vunpack.c.l.b16 %v1695
    %v1733 = vunpack.c.l.b16 %v1696
    %v1734 = vunpack.c.l.b16 %v1697
    %v1735 = vunpack.c.l.b16 %v1698
    %v1736 = vunpack.c.l.b16 %v1699
    %v1737 = vunpack.c.l.b16 %v1700
    %v1738 = vunpack.c.l.b16 %v1701
    %v1739 = vunpack.c.l.b16 %v1702
    %v1740 = vunpack.c.l.b16 %v1703
    %v1741 = vunpack.c.l.b16 %v1704
    %v1742 = vunpack.c.l.b16 %v1705
    %v1743 = vunpack.c.l.b16 %v1706
    %v1744 = vunpack.c.l.b16 %v1707
    %v1745 = vunpack.c.l.b16 %v1708
    %v1746 = vunpack.c.l.b16 %v1709
    %v1747 = vunpack.c.l.b16 %v1710
    %v1748 = vpack.c.b16 %v1733, %v1732
    %v1749 = vpack.c.b16 %v1735, %v1734
    %v1750 = vpack.c.b16 %v1737, %v1736
    %v1751 = vpack.c.b16 %v1739, %v1738
    %v1752 = vpack.c.b16 %v1741, %v1740
    %v1753 = vpack.c.b16 %v1743, %v1742
    %v1754 = vpack.c.b16 %v1745, %v1744
    %v1755 = vpack.c.b16 %v1747, %v1746
    %1764 = vmatpush.bf16.msra.mxu0 %v1755
    %1765 = vmatpush.bf16.msra.mxu0 %v1754
    %1766 = vmatpush.bf16.msra.mxu0 %v1753
    %1767 = vmatpush.bf16.msra.mxu0 %v1752
    %1768 = vmatpush.bf16.msra.mxu0 %v1751
    %1769 = vmatpush.bf16.msra.mxu0 %v1750
    %1770 = vmatpush.bf16.msra.mxu0 %v1749
    %1771 = vmatpush.bf16.msra.mxu0 %v1748
    %1772 = vmatmul.bf16.gmra.mxu0 %v1686
    %v1773 = vpop.f32.mrf.mxu0
    %v1774 = vadd.f32 %v1714, %v1773
    %v1775 = vpop.f32.mrf.mxu0
    %v1776 = vadd.f32 %v1714, %v1775
    %1777 = vmatmul.bf16.gmra.mxu0 %v1687
    %v1778 = vpop.f32.mrf.mxu0
    %v1779 = vadd.f32 %v1714, %v1778
    %v1780 = vpop.f32.mrf.mxu0
    %v1781 = vadd.f32 %v1714, %v1780
    %1782 = vmatmul.bf16.gmra.mxu0 %v1688
    %v1783 = vpop.f32.mrf.mxu0
    %v1784 = vadd.f32 %v1714, %v1783
    %v1785 = vpop.f32.mrf.mxu0
    %v1786 = vadd.f32 %v1714, %v1785
    %1787 = vmatmul.bf16.gmra.mxu0 %v1689
    %v1788 = vpop.f32.mrf.mxu0
    %v1789 = vadd.f32 %v1714, %v1788
    %v1790 = vpop.f32.mrf.mxu0
    %v1791 = vadd.f32 %v1714, %v1790
    %1792 = vmatmul.bf16.gmra.mxu0 %v1690
    %v1793 = vpop.f32.mrf.mxu0
    %v1794 = vadd.f32 %v1714, %v1793
    %v1795 = vpop.f32.mrf.mxu0
    %v1796 = vadd.f32 %v1714, %v1795
    %1797 = vmatmul.bf16.gmra.mxu0 %v1691
    %v1798 = vpop.f32.mrf.mxu0
    %v1799 = vadd.f32 %v1714, %v1798
    %v1800 = vpop.f32.mrf.mxu0
    %v1801 = vadd.f32 %v1714, %v1800
    %1802 = vmatmul.bf16.gmra.mxu0 %v1692
    %v1803 = vpop.f32.mrf.mxu0
    %v1804 = vadd.f32 %v1714, %v1803
    %v1805 = vpop.f32.mrf.mxu0
    %v1806 = vadd.f32 %v1714, %v1805
    %1807 = vmatmul.bf16.gmra.mxu0 %v1693
    %v1808 = vpop.f32.mrf.mxu0
    %v1809 = vadd.f32 %v1714, %v1808
    %v1810 = vpop.f32.mrf.mxu0
    %v1811 = vadd.f32 %v1714, %v1810
    %1812 = vdwg.mxu0
    %v1813 = vld [vmem:[#allocation11] sm:$0xf]
    %v1814 = vld [vmem:[#allocation11 + $0x4] sm:$0xf]
    %v1815 = vld [vmem:[#allocation11 + $0x8] sm:$0xf]
    %v1816 = vld [vmem:[#allocation11 + $0xc] sm:$0xf]
    %v1817 = vld [vmem:[#allocation11 + $0x10] sm:$0xf]
    %v1818 = vld [vmem:[#allocation11 + $0x14] sm:$0xf]
    %v1819 = vld [vmem:[#allocation11 + $0x18] sm:$0xf]
    %v1820 = vld [vmem:[#allocation11 + $0x1c] sm:$0xf]
    %v1821 = vld [vmem:[#allocation11 + $0x20] sm:$0xf]
    %v1822 = vld [vmem:[#allocation11 + $0x24] sm:$0xf]
    %v1823 = vld [vmem:[#allocation11 + $0x28] sm:$0xf]
    %v1824 = vld [vmem:[#allocation11 + $0x2c] sm:$0xf]
    %v1825 = vld [vmem:[#allocation11 + $0x30] sm:$0xf]
    %v1826 = vld [vmem:[#allocation11 + $0x34] sm:$0xf]
    %v1827 = vld [vmem:[#allocation11 + $0x38] sm:$0xf]
    %v1828 = vld [vmem:[#allocation11 + $0x3c] sm:$0xf]
    %v1829 = vld [vmem:[#allocation13] sm:$0xf]
    %v1830 = vld [vmem:[#allocation13 + $0x4] sm:$0xf]
    %v1831 = vld [vmem:[#allocation13 + $0x8] sm:$0xf]
    %v1832 = vld [vmem:[#allocation13 + $0xc] sm:$0xf]
    %v1833 = vld [vmem:[#allocation13 + $0x10] sm:$0xf]
    %v1834 = vld [vmem:[#allocation13 + $0x14] sm:$0xf]
    %v1835 = vld [vmem:[#allocation13 + $0x18] sm:$0xf]
    %v1836 = vld [vmem:[#allocation13 + $0x1c] sm:$0xf]
    %v1837 = vld [vmem:[#allocation13 + $0x20] sm:$0xf]
    %v1838 = vld [vmem:[#allocation13 + $0x24] sm:$0xf]
    %v1839 = vld [vmem:[#allocation13 + $0x28] sm:$0xf]
    %v1840 = vld [vmem:[#allocation13 + $0x2c] sm:$0xf]
    %v1841 = vld [vmem:[#allocation13 + $0x30] sm:$0xf]
    %v1842 = vld [vmem:[#allocation13 + $0x34] sm:$0xf]
    %v1843 = vld [vmem:[#allocation13 + $0x38] sm:$0xf]
    %v1844 = vld [vmem:[#allocation13 + $0x3c] sm:$0xf]
    %v1845 = vld [vmem:[%s8] sm:$0x1]
    %v1847 = vperm.slane %v1845, 0
    %v1865 = vunpack.c.l.b16 %v1813
    %v1866 = vunpack.c.l.b16 %v1814
    %v1867 = vunpack.c.l.b16 %v1815
    %v1868 = vunpack.c.l.b16 %v1816
    %v1869 = vunpack.c.l.b16 %v1817
    %v1870 = vunpack.c.l.b16 %v1818
    %v1871 = vunpack.c.l.b16 %v1819
    %v1872 = vunpack.c.l.b16 %v1820
    %v1873 = vunpack.c.l.b16 %v1821
    %v1874 = vunpack.c.l.b16 %v1822
    %v1875 = vunpack.c.l.b16 %v1823
    %v1876 = vunpack.c.l.b16 %v1824
    %v1877 = vunpack.c.l.b16 %v1825
    %v1878 = vunpack.c.l.b16 %v1826
    %v1879 = vunpack.c.l.b16 %v1827
    %v1880 = vunpack.c.l.b16 %v1828
    %v1881 = vpack.c.b16 %v1866, %v1865
    %v1882 = vpack.c.b16 %v1868, %v1867
    %v1883 = vpack.c.b16 %v1870, %v1869
    %v1884 = vpack.c.b16 %v1872, %v1871
    %v1885 = vpack.c.b16 %v1874, %v1873
    %v1886 = vpack.c.b16 %v1876, %v1875
    %v1887 = vpack.c.b16 %v1878, %v1877
    %v1888 = vpack.c.b16 %v1880, %v1879
    %v1913 = vunpack.c.l.b16 %v1829
    %v1914 = vunpack.c.l.b16 %v1830
    %v1915 = vunpack.c.l.b16 %v1831
    %v1916 = vunpack.c.l.b16 %v1832
    %v1917 = vunpack.c.l.b16 %v1833
    %v1918 = vunpack.c.l.b16 %v1834
    %v1919 = vunpack.c.l.b16 %v1835
    %v1920 = vunpack.c.l.b16 %v1836
    %v1921 = vunpack.c.l.b16 %v1837
    %v1922 = vunpack.c.l.b16 %v1838
    %v1923 = vunpack.c.l.b16 %v1839
    %v1924 = vunpack.c.l.b16 %v1840
    %v1925 = vunpack.c.l.b16 %v1841
    %v1926 = vunpack.c.l.b16 %v1842
    %v1927 = vunpack.c.l.b16 %v1843
    %v1928 = vunpack.c.l.b16 %v1844
    %v1929 = vpack.c.b16 %v1914, %v1913
    %v1930 = vpack.c.b16 %v1916, %v1915
    %v1931 = vpack.c.b16 %v1918, %v1917
    %v1932 = vpack.c.b16 %v1920, %v1919
    %v1933 = vpack.c.b16 %v1922, %v1921
    %v1934 = vpack.c.b16 %v1924, %v1923
    %v1935 = vpack.c.b16 %v1926, %v1925
    %v1936 = vpack.c.b16 %v1928, %v1927
    %1945 = vmatpush.bf16.msra.mxu0 %v1936
    %1946 = vmatpush.bf16.msra.mxu0 %v1935
    %1947 = vmatpush.bf16.msra.mxu0 %v1934
    %1948 = vmatpush.bf16.msra.mxu0 %v1933
    %1949 = vmatpush.bf16.msra.mxu0 %v1932
    %1950 = vmatpush.bf16.msra.mxu0 %v1931
    %1951 = vmatpush.bf16.msra.mxu0 %v1930
    %1952 = vmatpush.bf16.msra.mxu0 %v1929
    %1953 = vmatmul.bf16.gmra.mxu0 %v1881
    %v1954 = vpop.f32.mrf.mxu0
    %v1955 = vadd.f32 %v1847, %v1954
    %v1956 = vpop.f32.mrf.mxu0
    %v1957 = vadd.f32 %v1847, %v1956
    %1958 = vmatmul.bf16.gmra.mxu0 %v1882
    %v1959 = vpop.f32.mrf.mxu0
    %v1960 = vadd.f32 %v1847, %v1959
    %v1961 = vpop.f32.mrf.mxu0
    %v1962 = vadd.f32 %v1847, %v1961
    %1963 = vmatmul.bf16.gmra.mxu0 %v1883
    %v1964 = vpop.f32.mrf.mxu0
    %v1965 = vadd.f32 %v1847, %v1964
    %v1966 = vpop.f32.mrf.mxu0
    %v1967 = vadd.f32 %v1847, %v1966
    %1968 = vmatmul.bf16.gmra.mxu0 %v1884
    %v1969 = vpop.f32.mrf.mxu0
    %v1970 = vadd.f32 %v1847, %v1969
    %v1971 = vpop.f32.mrf.mxu0
    %v1972 = vadd.f32 %v1847, %v1971
    %1973 = vmatmul.bf16.gmra.mxu0 %v1885
    %v1974 = vpop.f32.mrf.mxu0
    %v1975 = vadd.f32 %v1847, %v1974
    %v1976 = vpop.f32.mrf.mxu0
    %v1977 = vadd.f32 %v1847, %v1976
    %1978 = vmatmul.bf16.gmra.mxu0 %v1886
    %v1979 = vpop.f32.mrf.mxu0
    %v1980 = vadd.f32 %v1847, %v1979
    %v1981 = vpop.f32.mrf.mxu0
    %v1982 = vadd.f32 %v1847, %v1981
    %1983 = vmatmul.bf16.gmra.mxu0 %v1887
    %v1984 = vpop.f32.mrf.mxu0
    %v1985 = vadd.f32 %v1847, %v1984
    %v1986 = vpop.f32.mrf.mxu0
    %v1987 = vadd.f32 %v1847, %v1986
    %1988 = vmatmul.bf16.gmra.mxu0 %v1888
    %v1989 = vpop.f32.mrf.mxu0
    %v1990 = vadd.f32 %v1847, %v1989
    %v1991 = vpop.f32.mrf.mxu0
    %v1992 = vadd.f32 %v1847, %v1991
    %1993 = vdwg.mxu0
    %v1994 = vpack.c.bf16 %v959, %v959
    %v1995 = vpack.c.bf16 %v961, %v961
    %v1996 = vpack.c.bf16 %v964, %v964
    %v1997 = vpack.c.bf16 %v966, %v966
    %v1998 = vpack.c.bf16 %v969, %v969
    %v1999 = vpack.c.bf16 %v971, %v971
    %v2000 = vpack.c.bf16 %v974, %v974
    %v2001 = vpack.c.bf16 %v976, %v976
    %v2002 = vpack.c.bf16 %v979, %v979
    %v2003 = vpack.c.bf16 %v981, %v981
    %v2004 = vpack.c.bf16 %v984, %v984
    %v2005 = vpack.c.bf16 %v986, %v986
    %v2006 = vpack.c.bf16 %v989, %v989
    %v2007 = vpack.c.bf16 %v991, %v991
    %v2008 = vpack.c.bf16 %v994, %v994
    %v2009 = vpack.c.bf16 %v996, %v996
    %v2010 = vpack.c.bf16 %v1774, %v1774
    %v2011 = vpack.c.bf16 %v1776, %v1776
    %v2012 = vpack.c.bf16 %v1779, %v1779
    %v2013 = vpack.c.bf16 %v1781, %v1781
    %v2014 = vpack.c.bf16 %v1784, %v1784
    %v2015 = vpack.c.bf16 %v1786, %v1786
    %v2016 = vpack.c.bf16 %v1789, %v1789
    %v2017 = vpack.c.bf16 %v1791, %v1791
    %v2018 = vpack.c.bf16 %v1794, %v1794
    %v2019 = vpack.c.bf16 %v1796, %v1796
    %v2020 = vpack.c.bf16 %v1799, %v1799
    %v2021 = vpack.c.bf16 %v1801, %v1801
    %v2022 = vpack.c.bf16 %v1804, %v1804
    %v2023 = vpack.c.bf16 %v1806, %v1806
    %v2024 = vpack.c.bf16 %v1809, %v1809
    %v2025 = vpack.c.bf16 %v1811, %v1811
    %v2026 = vpack.c.bf16 %v1955, %v1955
    %v2027 = vpack.c.bf16 %v1957, %v1957
    %v2028 = vpack.c.bf16 %v1960, %v1960
    %v2029 = vpack.c.bf16 %v1962, %v1962
    %v2030 = vpack.c.bf16 %v1965, %v1965
    %v2031 = vpack.c.bf16 %v1967, %v1967
    %v2032 = vpack.c.bf16 %v1970, %v1970
    %v2033 = vpack.c.bf16 %v1972, %v1972
    %v2034 = vpack.c.bf16 %v1975, %v1975
    %v2035 = vpack.c.bf16 %v1977, %v1977
    %v2036 = vpack.c.bf16 %v1980, %v1980
    %v2037 = vpack.c.bf16 %v1982, %v1982
    %v2038 = vpack.c.bf16 %v1985, %v1985
    %v2039 = vpack.c.bf16 %v1987, %v1987
    %v2040 = vpack.c.bf16 %v1990, %v1990
    %v2041 = vpack.c.bf16 %v1992, %v1992
    %v2058 = vunpack.c.l.b16 %v1994
    %v2059 = vunpack.c.l.b16 %v1995
    %v2060 = vunpack.c.l.b16 %v1996
    %v2061 = vunpack.c.l.b16 %v1997
    %v2062 = vunpack.c.l.b16 %v1998
    %v2063 = vunpack.c.l.b16 %v1999
    %v2064 = vunpack.c.l.b16 %v2000
    %v2065 = vunpack.c.l.b16 %v2001
    %v2066 = vunpack.c.l.b16 %v2002
    %v2067 = vunpack.c.l.b16 %v2003
    %v2068 = vunpack.c.l.b16 %v2004
    %v2069 = vunpack.c.l.b16 %v2005
    %v2070 = vunpack.c.l.b16 %v2006
    %v2071 = vunpack.c.l.b16 %v2007
    %v2072 = vunpack.c.l.b16 %v2008
    %v2073 = vunpack.c.l.b16 %v2009
    %v2074 = vpack.c.b16 %v2059, %v2058
    %v2075 = vpack.c.b16 %v2061, %v2060
    %v2076 = vpack.c.b16 %v2063, %v2062
    %v2077 = vpack.c.b16 %v2065, %v2064
    %v2078 = vpack.c.b16 %v2067, %v2066
    %v2079 = vpack.c.b16 %v2069, %v2068
    %v2080 = vpack.c.b16 %v2071, %v2070
    %v2081 = vpack.c.b16 %v2073, %v2072
    %v2106 = vunpack.c.l.b16 %v2010
    %v2107 = vunpack.c.l.b16 %v2011
    %v2108 = vunpack.c.l.b16 %v2012
    %v2109 = vunpack.c.l.b16 %v2013
    %v2110 = vunpack.c.l.b16 %v2014
    %v2111 = vunpack.c.l.b16 %v2015
    %v2112 = vunpack.c.l.b16 %v2016
    %v2113 = vunpack.c.l.b16 %v2017
    %v2114 = vunpack.c.l.b16 %v2018
    %v2115 = vunpack.c.l.b16 %v2019
    %v2116 = vunpack.c.l.b16 %v2020
    %v2117 = vunpack.c.l.b16 %v2021
    %v2118 = vunpack.c.l.b16 %v2022
    %v2119 = vunpack.c.l.b16 %v2023
    %v2120 = vunpack.c.l.b16 %v2024
    %v2121 = vunpack.c.l.b16 %v2025
    %v2122 = vpack.c.b16 %v2107, %v2106
    %v2123 = vpack.c.b16 %v2109, %v2108
    %v2124 = vpack.c.b16 %v2111, %v2110
    %v2125 = vpack.c.b16 %v2113, %v2112
    %v2126 = vpack.c.b16 %v2115, %v2114
    %v2127 = vpack.c.b16 %v2117, %v2116
    %v2128 = vpack.c.b16 %v2119, %v2118
    %v2129 = vpack.c.b16 %v2121, %v2120
    %v2154 = vunpack.c.l.b16 %v2026
    %v2155 = vunpack.c.l.b16 %v2027
    %v2156 = vunpack.c.l.b16 %v2028
    %v2157 = vunpack.c.l.b16 %v2029
    %v2158 = vunpack.c.l.b16 %v2030
    %v2159 = vunpack.c.l.b16 %v2031
    %v2160 = vunpack.c.l.b16 %v2032
    %v2161 = vunpack.c.l.b16 %v2033
    %v2162 = vunpack.c.l.b16 %v2034
    %v2163 = vunpack.c.l.b16 %v2035
    %v2164 = vunpack.c.l.b16 %v2036
    %v2165 = vunpack.c.l.b16 %v2037
    %v2166 = vunpack.c.l.b16 %v2038
    %v2167 = vunpack.c.l.b16 %v2039
    %v2168 = vunpack.c.l.b16 %v2040
    %v2169 = vunpack.c.l.b16 %v2041
    %v2170 = vpack.c.b16 %v2155, %v2154
    %v2171 = vpack.c.b16 %v2157, %v2156
    %v2172 = vpack.c.b16 %v2159, %v2158
    %v2173 = vpack.c.b16 %v2161, %v2160
    %v2174 = vpack.c.b16 %v2163, %v2162
    %v2175 = vpack.c.b16 %v2165, %v2164
    %v2176 = vpack.c.b16 %v2167, %v2166
    %v2177 = vpack.c.b16 %v2169, %v2168
    %v2186 = vld [vmem:[#allocation14] sm:$0xf]
    %v2187 = vld [vmem:[#allocation14 + $0x4] sm:$0xf]
    %v2188 = vld [vmem:[#allocation14 + $0x8] sm:$0xf]
    %v2189 = vld [vmem:[#allocation14 + $0xc] sm:$0xf]
    %v2190 = vld [vmem:[#allocation14 + $0x10] sm:$0xf]
    %v2191 = vld [vmem:[#allocation14 + $0x14] sm:$0xf]
    %v2192 = vld [vmem:[#allocation14 + $0x18] sm:$0xf]
    %v2193 = vld [vmem:[#allocation14 + $0x1c] sm:$0xf]
    %v2194 = vld [vmem:[#allocation14 + $0x20] sm:$0xf]
    %v2195 = vld [vmem:[#allocation14 + $0x24] sm:$0xf]
    %v2196 = vld [vmem:[#allocation14 + $0x28] sm:$0xf]
    %v2197 = vld [vmem:[#allocation14 + $0x2c] sm:$0xf]
    %v2198 = vld [vmem:[#allocation14 + $0x30] sm:$0xf]
    %v2199 = vld [vmem:[#allocation14 + $0x34] sm:$0xf]
    %v2200 = vld [vmem:[#allocation14 + $0x38] sm:$0xf]
    %v2201 = vld [vmem:[#allocation14 + $0x3c] sm:$0xf]
    %v2202 = vld [vmem:[#allocation14 + $0x40] sm:$0xf]
    %v2203 = vld [vmem:[#allocation14 + $0x44] sm:$0xf]
    %v2204 = vld [vmem:[#allocation14 + $0x48] sm:$0xf]
    %v2205 = vld [vmem:[#allocation14 + $0x4c] sm:$0xf]
    %v2206 = vld [vmem:[#allocation14 + $0x50] sm:$0xf]
    %v2207 = vld [vmem:[#allocation14 + $0x54] sm:$0xf]
    %v2208 = vld [vmem:[#allocation14 + $0x58] sm:$0xf]
    %v2209 = vld [vmem:[#allocation14 + $0x5c] sm:$0xf]
    %v2210 = vld [vmem:[#allocation14 + $0x60] sm:$0xf]
    %v2211 = vld [vmem:[#allocation14 + $0x64] sm:$0xf]
    %v2212 = vld [vmem:[#allocation14 + $0x68] sm:$0xf]
    %v2213 = vld [vmem:[#allocation14 + $0x6c] sm:$0xf]
    %v2214 = vld [vmem:[#allocation14 + $0x70] sm:$0xf]
    %v2215 = vld [vmem:[#allocation14 + $0x74] sm:$0xf]
    %v2216 = vld [vmem:[#allocation14 + $0x78] sm:$0xf]
    %v2217 = vld [vmem:[#allocation14 + $0x7c] sm:$0xf]
    %v2218 = vld [vmem:[#allocation14 + $0x80] sm:$0xf]
    %v2219 = vld [vmem:[#allocation14 + $0x84] sm:$0xf]
    %v2220 = vld [vmem:[#allocation14 + $0x88] sm:$0xf]
    %v2221 = vld [vmem:[#allocation14 + $0x8c] sm:$0xf]
    %v2222 = vld [vmem:[#allocation14 + $0x90] sm:$0xf]
    %v2223 = vld [vmem:[#allocation14 + $0x94] sm:$0xf]
    %v2224 = vld [vmem:[#allocation14 + $0x98] sm:$0xf]
    %v2225 = vld [vmem:[#allocation14 + $0x9c] sm:$0xf]
    %v2226 = vld [vmem:[#allocation14 + $0xa0] sm:$0xf]
    %v2227 = vld [vmem:[#allocation14 + $0xa4] sm:$0xf]
    %v2228 = vld [vmem:[#allocation14 + $0xa8] sm:$0xf]
    %v2229 = vld [vmem:[#allocation14 + $0xac] sm:$0xf]
    %v2230 = vld [vmem:[#allocation14 + $0xb0] sm:$0xf]
    %v2231 = vld [vmem:[#allocation14 + $0xb4] sm:$0xf]
    %v2232 = vld [vmem:[#allocation14 + $0xb8] sm:$0xf]
    %v2233 = vld [vmem:[#allocation14 + $0xbc] sm:$0xf]
    %v2234 = vld [vmem:[%s10] sm:$0x1]
    %v2236 = vperm.slane %v2234, 0
    %v2286 = vunpack.c.l.b16 %v2186
    %v2287 = vunpack.c.l.b16 %v2187
    %v2288 = vunpack.c.l.b16 %v2188
    %v2289 = vunpack.c.l.b16 %v2189
    %v2290 = vunpack.c.l.b16 %v2190
    %v2291 = vunpack.c.l.b16 %v2191
    %v2292 = vunpack.c.l.b16 %v2192
    %v2293 = vunpack.c.l.b16 %v2193
    %v2294 = vunpack.c.l.b16 %v2194
    %v2295 = vunpack.c.l.b16 %v2195
    %v2296 = vunpack.c.l.b16 %v2196
    %v2297 = vunpack.c.l.b16 %v2197
    %v2298 = vunpack.c.l.b16 %v2198
    %v2299 = vunpack.c.l.b16 %v2199
    %v2300 = vunpack.c.l.b16 %v2200
    %v2301 = vunpack.c.l.b16 %v2201
    %v2302 = vunpack.c.l.b16 %v2202
    %v2303 = vunpack.c.l.b16 %v2203
    %v2304 = vunpack.c.l.b16 %v2204
    %v2305 = vunpack.c.l.b16 %v2205
    %v2306 = vunpack.c.l.b16 %v2206
    %v2307 = vunpack.c.l.b16 %v2207
    %v2308 = vunpack.c.l.b16 %v2208
    %v2309 = vunpack.c.l.b16 %v2209
    %v2310 = vunpack.c.l.b16 %v2210
    %v2311 = vunpack.c.l.b16 %v2211
    %v2312 = vunpack.c.l.b16 %v2212
    %v2313 = vunpack.c.l.b16 %v2213
    %v2314 = vunpack.c.l.b16 %v2214
    %v2315 = vunpack.c.l.b16 %v2215
    %v2316 = vunpack.c.l.b16 %v2216
    %v2317 = vunpack.c.l.b16 %v2217
    %v2318 = vunpack.c.l.b16 %v2218
    %v2319 = vunpack.c.l.b16 %v2219
    %v2320 = vunpack.c.l.b16 %v2220
    %v2321 = vunpack.c.l.b16 %v2221
    %v2322 = vunpack.c.l.b16 %v2222
    %v2323 = vunpack.c.l.b16 %v2223
    %v2324 = vunpack.c.l.b16 %v2224
    %v2325 = vunpack.c.l.b16 %v2225
    %v2326 = vunpack.c.l.b16 %v2226
    %v2327 = vunpack.c.l.b16 %v2227
    %v2328 = vunpack.c.l.b16 %v2228
    %v2329 = vunpack.c.l.b16 %v2229
    %v2330 = vunpack.c.l.b16 %v2230
    %v2331 = vunpack.c.l.b16 %v2231
    %v2332 = vunpack.c.l.b16 %v2232
    %v2333 = vunpack.c.l.b16 %v2233
    %v2334 = vpack.c.b16 %v2287, %v2286
    %v2335 = vpack.c.b16 %v2289, %v2288
    %v2336 = vpack.c.b16 %v2291, %v2290
    %v2337 = vpack.c.b16 %v2293, %v2292
    %v2338 = vpack.c.b16 %v2295, %v2294
    %v2339 = vpack.c.b16 %v2297, %v2296
    %v2340 = vpack.c.b16 %v2299, %v2298
    %v2341 = vpack.c.b16 %v2301, %v2300
    %v2342 = vpack.c.b16 %v2303, %v2302
    %v2343 = vpack.c.b16 %v2305, %v2304
    %v2344 = vpack.c.b16 %v2307, %v2306
    %v2345 = vpack.c.b16 %v2309, %v2308
    %v2346 = vpack.c.b16 %v2311, %v2310
    %v2347 = vpack.c.b16 %v2313, %v2312
    %v2348 = vpack.c.b16 %v2315, %v2314
    %v2349 = vpack.c.b16 %v2317, %v2316
    %v2350 = vpack.c.b16 %v2319, %v2318
    %v2351 = vpack.c.b16 %v2321, %v2320
    %v2352 = vpack.c.b16 %v2323, %v2322
    %v2353 = vpack.c.b16 %v2325, %v2324
    %v2354 = vpack.c.b16 %v2327, %v2326
    %v2355 = vpack.c.b16 %v2329, %v2328
    %v2356 = vpack.c.b16 %v2331, %v2330
    %v2357 = vpack.c.b16 %v2333, %v2332
    %2382 = vmatpush.bf16.msra.mxu0 %v2341
    %2383 = vmatpush.bf16.msra.mxu0 %v2340
    %2384 = vmatpush.bf16.msra.mxu0 %v2339
    %2385 = vmatpush.bf16.msra.mxu0 %v2338
    %2386 = vmatpush.bf16.msra.mxu0 %v2337
    %2387 = vmatpush.bf16.msra.mxu0 %v2336
    %2388 = vmatpush.bf16.msra.mxu0 %v2335
    %2389 = vmatpush.bf16.msra.mxu0 %v2334
    %2390 = vmatmul.bf16.gmra.mxu0 %v2074
    %v2391 = vpop.f32.mrf.mxu0
    %v2392 = vadd.f32 %v2236, %v2391
    %v2393 = vpop.f32.mrf.mxu0
    %v2394 = vadd.f32 %v2236, %v2393
    %2395 = vmatmul.bf16.gmra.mxu0 %v2075
    %v2396 = vpop.f32.mrf.mxu0
    %v2397 = vadd.f32 %v2236, %v2396
    %v2398 = vpop.f32.mrf.mxu0
    %v2399 = vadd.f32 %v2236, %v2398
    %2400 = vmatmul.bf16.gmra.mxu0 %v2076
    %v2401 = vpop.f32.mrf.mxu0
    %v2402 = vadd.f32 %v2236, %v2401
    %v2403 = vpop.f32.mrf.mxu0
    %v2404 = vadd.f32 %v2236, %v2403
    %2405 = vmatmul.bf16.gmra.mxu0 %v2077
    %v2406 = vpop.f32.mrf.mxu0
    %v2407 = vadd.f32 %v2236, %v2406
    %v2408 = vpop.f32.mrf.mxu0
    %v2409 = vadd.f32 %v2236, %v2408
    %2410 = vmatmul.bf16.gmra.mxu0 %v2078
    %v2411 = vpop.f32.mrf.mxu0
    %v2412 = vadd.f32 %v2236, %v2411
    %v2413 = vpop.f32.mrf.mxu0
    %v2414 = vadd.f32 %v2236, %v2413
    %2415 = vmatmul.bf16.gmra.mxu0 %v2079
    %v2416 = vpop.f32.mrf.mxu0
    %v2417 = vadd.f32 %v2236, %v2416
    %v2418 = vpop.f32.mrf.mxu0
    %v2419 = vadd.f32 %v2236, %v2418
    %2420 = vmatmul.bf16.gmra.mxu0 %v2080
    %v2421 = vpop.f32.mrf.mxu0
    %v2422 = vadd.f32 %v2236, %v2421
    %v2423 = vpop.f32.mrf.mxu0
    %v2424 = vadd.f32 %v2236, %v2423
    %2425 = vmatmul.bf16.gmra.mxu0 %v2081
    %v2426 = vpop.f32.mrf.mxu0
    %v2427 = vadd.f32 %v2236, %v2426
    %v2428 = vpop.f32.mrf.mxu0
    %v2429 = vadd.f32 %v2236, %v2428
    %2430 = vdwg.mxu0
    %2431 = vmatpush.bf16.msra.mxu0 %v2349
    %2432 = vmatpush.bf16.msra.mxu0 %v2348
    %2433 = vmatpush.bf16.msra.mxu0 %v2347
    %2434 = vmatpush.bf16.msra.mxu0 %v2346
    %2435 = vmatpush.bf16.msra.mxu0 %v2345
    %2436 = vmatpush.bf16.msra.mxu0 %v2344
    %2437 = vmatpush.bf16.msra.mxu0 %v2343
    %2438 = vmatpush.bf16.msra.mxu0 %v2342
    %2439 = vmatmul.bf16.gmra.mxu0 %v2122
    %v2440 = vpop.f32.mrf.mxu0
    %v2441 = vadd.f32 %v2392, %v2440
    %v2442 = vpop.f32.mrf.mxu0
    %v2443 = vadd.f32 %v2394, %v2442
    %2444 = vmatmul.bf16.gmra.mxu0 %v2123
    %v2445 = vpop.f32.mrf.mxu0
    %v2446 = vadd.f32 %v2397, %v2445
    %v2447 = vpop.f32.mrf.mxu0
    %v2448 = vadd.f32 %v2399, %v2447
    %2449 = vmatmul.bf16.gmra.mxu0 %v2124
    %v2450 = vpop.f32.mrf.mxu0
    %v2451 = vadd.f32 %v2402, %v2450
    %v2452 = vpop.f32.mrf.mxu0
    %v2453 = vadd.f32 %v2404, %v2452
    %2454 = vmatmul.bf16.gmra.mxu0 %v2125
    %v2455 = vpop.f32.mrf.mxu0
    %v2456 = vadd.f32 %v2407, %v2455
    %v2457 = vpop.f32.mrf.mxu0
    %v2458 = vadd.f32 %v2409, %v2457
    %2459 = vmatmul.bf16.gmra.mxu0 %v2126
    %v2460 = vpop.f32.mrf.mxu0
    %v2461 = vadd.f32 %v2412, %v2460
    %v2462 = vpop.f32.mrf.mxu0
    %v2463 = vadd.f32 %v2414, %v2462
    %2464 = vmatmul.bf16.gmra.mxu0 %v2127
    %v2465 = vpop.f32.mrf.mxu0
    %v2466 = vadd.f32 %v2417, %v2465
    %v2467 = vpop.f32.mrf.mxu0
    %v2468 = vadd.f32 %v2419, %v2467
    %2469 = vmatmul.bf16.gmra.mxu0 %v2128
    %v2470 = vpop.f32.mrf.mxu0
    %v2471 = vadd.f32 %v2422, %v2470
    %v2472 = vpop.f32.mrf.mxu0
    %v2473 = vadd.f32 %v2424, %v2472
    %2474 = vmatmul.bf16.gmra.mxu0 %v2129
    %v2475 = vpop.f32.mrf.mxu0
    %v2476 = vadd.f32 %v2427, %v2475
    %v2477 = vpop.f32.mrf.mxu0
    %v2478 = vadd.f32 %v2429, %v2477
    %2479 = vdwg.mxu0
    %2480 = vmatpush.bf16.msra.mxu0 %v2357
    %2481 = vmatpush.bf16.msra.mxu0 %v2356
    %2482 = vmatpush.bf16.msra.mxu0 %v2355
    %2483 = vmatpush.bf16.msra.mxu0 %v2354
    %2484 = vmatpush.bf16.msra.mxu0 %v2353
    %2485 = vmatpush.bf16.msra.mxu0 %v2352
    %2486 = vmatpush.bf16.msra.mxu0 %v2351
    %2487 = vmatpush.bf16.msra.mxu0 %v2350
    %2488 = vmatmul.bf16.gmra.mxu0 %v2170
    %v2489 = vpop.f32.mrf.mxu0
    %v2490 = vadd.f32 %v2441, %v2489
    %v2491 = vpop.f32.mrf.mxu0
    %v2492 = vadd.f32 %v2443, %v2491
    %2493 = vmatmul.bf16.gmra.mxu0 %v2171
    %v2494 = vpop.f32.mrf.mxu0
    %v2495 = vadd.f32 %v2446, %v2494
    %v2496 = vpop.f32.mrf.mxu0
    %v2497 = vadd.f32 %v2448, %v2496
    %2498 = vmatmul.bf16.gmra.mxu0 %v2172
    %v2499 = vpop.f32.mrf.mxu0
    %v2500 = vadd.f32 %v2451, %v2499
    %v2501 = vpop.f32.mrf.mxu0
    %v2502 = vadd.f32 %v2453, %v2501
    %2503 = vmatmul.bf16.gmra.mxu0 %v2173
    %v2504 = vpop.f32.mrf.mxu0
    %v2505 = vadd.f32 %v2456, %v2504
    %v2506 = vpop.f32.mrf.mxu0
    %v2507 = vadd.f32 %v2458, %v2506
    %2508 = vmatmul.bf16.gmra.mxu0 %v2174
    %v2509 = vpop.f32.mrf.mxu0
    %v2510 = vadd.f32 %v2461, %v2509
    %v2511 = vpop.f32.mrf.mxu0
    %v2512 = vadd.f32 %v2463, %v2511
    %2513 = vmatmul.bf16.gmra.mxu0 %v2175
    %v2514 = vpop.f32.mrf.mxu0
    %v2515 = vadd.f32 %v2466, %v2514
    %v2516 = vpop.f32.mrf.mxu0
    %v2517 = vadd.f32 %v2468, %v2516
    %2518 = vmatmul.bf16.gmra.mxu0 %v2176
    %v2519 = vpop.f32.mrf.mxu0
    %v2520 = vadd.f32 %v2471, %v2519
    %v2521 = vpop.f32.mrf.mxu0
    %v2522 = vadd.f32 %v2473, %v2521
    %2523 = vmatmul.bf16.gmra.mxu0 %v2177
    %v2524 = vpop.f32.mrf.mxu0
    %v2525 = vadd.f32 %v2476, %v2524
    %v2526 = vpop.f32.mrf.mxu0
    %v2527 = vadd.f32 %v2478, %v2526
    %2528 = vdwg.mxu0
    %v2529 = vpack.c.bf16 %v2492, %v2490
    %v2530 = vpack.c.bf16 %v2497, %v2495
    %v2531 = vpack.c.bf16 %v2502, %v2500
    %v2532 = vpack.c.bf16 %v2507, %v2505
    %v2533 = vpack.c.bf16 %v2512, %v2510
    %v2534 = vpack.c.bf16 %v2517, %v2515
    %v2535 = vpack.c.bf16 %v2522, %v2520
    %v2536 = vpack.c.bf16 %v2527, %v2525
    %v2537 = vld [vmem:[#allocation16] sm:$0xf]
    %v2538 = vld [vmem:[#allocation16 + $0x4] sm:$0xf]
    %v2539 = vld [vmem:[#allocation16 + $0x8] sm:$0xf]
    %v2540 = vld [vmem:[#allocation16 + $0xc] sm:$0xf]
    %v2541 = vld [vmem:[#allocation16 + $0x10] sm:$0xf]
    %v2542 = vld [vmem:[#allocation16 + $0x14] sm:$0xf]
    %v2543 = vld [vmem:[#allocation16 + $0x18] sm:$0xf]
    %v2544 = vld [vmem:[#allocation16 + $0x1c] sm:$0xf]
    %v2545 = vld [vmem:[#allocation16 + $0x20] sm:$0xf]
    %v2546 = vld [vmem:[#allocation16 + $0x24] sm:$0xf]
    %v2547 = vld [vmem:[#allocation16 + $0x28] sm:$0xf]
    %v2548 = vld [vmem:[#allocation16 + $0x2c] sm:$0xf]
    %v2549 = vld [vmem:[#allocation16 + $0x30] sm:$0xf]
    %v2550 = vld [vmem:[#allocation16 + $0x34] sm:$0xf]
    %v2551 = vld [vmem:[#allocation16 + $0x38] sm:$0xf]
    %v2552 = vld [vmem:[#allocation16 + $0x3c] sm:$0xf]
    %v2553 = vld [vmem:[%s12] sm:$0x1]
    %v2555 = vperm.slane %v2553, 0
    %v2573 = vunpack.c.l.b16 %v2537
    %v2574 = vunpack.c.l.b16 %v2538
    %v2575 = vunpack.c.l.b16 %v2539
    %v2576 = vunpack.c.l.b16 %v2540
    %v2577 = vunpack.c.l.b16 %v2541
    %v2578 = vunpack.c.l.b16 %v2542
    %v2579 = vunpack.c.l.b16 %v2543
    %v2580 = vunpack.c.l.b16 %v2544
    %v2581 = vunpack.c.l.b16 %v2545
    %v2582 = vunpack.c.l.b16 %v2546
    %v2583 = vunpack.c.l.b16 %v2547
    %v2584 = vunpack.c.l.b16 %v2548
    %v2585 = vunpack.c.l.b16 %v2549
    %v2586 = vunpack.c.l.b16 %v2550
    %v2587 = vunpack.c.l.b16 %v2551
    %v2588 = vunpack.c.l.b16 %v2552
    %v2589 = vpack.c.b16 %v2574, %v2573
    %v2590 = vpack.c.b16 %v2576, %v2575
    %v2591 = vpack.c.b16 %v2578, %v2577
    %v2592 = vpack.c.b16 %v2580, %v2579
    %v2593 = vpack.c.b16 %v2582, %v2581
    %v2594 = vpack.c.b16 %v2584, %v2583
    %v2595 = vpack.c.b16 %v2586, %v2585
    %v2596 = vpack.c.b16 %v2588, %v2587
    %2605 = vmatpush.bf16.msra.mxu0 %v2596
    %2606 = vmatpush.bf16.msra.mxu0 %v2595
    %2607 = vmatpush.bf16.msra.mxu0 %v2594
    %2608 = vmatpush.bf16.msra.mxu0 %v2593
    %2609 = vmatpush.bf16.msra.mxu0 %v2592
    %2610 = vmatpush.bf16.msra.mxu0 %v2591
    %2611 = vmatpush.bf16.msra.mxu0 %v2590
    %2612 = vmatpush.bf16.msra.mxu0 %v2589
    %2613 = vmatmul.bf16.gmra.mxu0 %v2529
    %v2614 = vpop.f32.mrf.mxu0
    %v2615 = vadd.f32 %v2555, %v2614
    %v2616 = vpop.f32.mrf.mxu0
    %v2617 = vadd.f32 %v2555, %v2616
    %2618 = vmatmul.bf16.gmra.mxu0 %v2530
    %v2619 = vpop.f32.mrf.mxu0
    %v2620 = vadd.f32 %v2555, %v2619
    %v2621 = vpop.f32.mrf.mxu0
    %v2622 = vadd.f32 %v2555, %v2621
    %2623 = vmatmul.bf16.gmra.mxu0 %v2531
    %v2624 = vpop.f32.mrf.mxu0
    %v2625 = vadd.f32 %v2555, %v2624
    %v2626 = vpop.f32.mrf.mxu0
    %v2627 = vadd.f32 %v2555, %v2626
    %2628 = vmatmul.bf16.gmra.mxu0 %v2532
    %v2629 = vpop.f32.mrf.mxu0
    %v2630 = vadd.f32 %v2555, %v2629
    %v2631 = vpop.f32.mrf.mxu0
    %v2632 = vadd.f32 %v2555, %v2631
    %2633 = vmatmul.bf16.gmra.mxu0 %v2533
    %v2634 = vpop.f32.mrf.mxu0
    %v2635 = vadd.f32 %v2555, %v2634
    %v2636 = vpop.f32.mrf.mxu0
    %v2637 = vadd.f32 %v2555, %v2636
    %2638 = vmatmul.bf16.gmra.mxu0 %v2534
    %v2639 = vpop.f32.mrf.mxu0
    %v2640 = vadd.f32 %v2555, %v2639
    %v2641 = vpop.f32.mrf.mxu0
    %v2642 = vadd.f32 %v2555, %v2641
    %2643 = vmatmul.bf16.gmra.mxu0 %v2535
    %v2644 = vpop.f32.mrf.mxu0
    %v2645 = vadd.f32 %v2555, %v2644
    %v2646 = vpop.f32.mrf.mxu0
    %v2647 = vadd.f32 %v2555, %v2646
    %2648 = vmatmul.bf16.gmra.mxu0 %v2536
    %v2649 = vpop.f32.mrf.mxu0
    %v2650 = vadd.f32 %v2555, %v2649
    %v2651 = vpop.f32.mrf.mxu0
    %v2652 = vadd.f32 %v2555, %v2651
    %2653 = vdwg.mxu0
    %v2654 = vsel %vm188, %v2615, -1e+30
    %v2655 = vsel %vm188, %v2617, -1e+30
    %v2656 = vsel %vm188, %v2620, -1e+30
    %v2657 = vsel %vm188, %v2622, -1e+30
    %v2658 = vsel %vm188, %v2625, -1e+30
    %v2659 = vsel %vm188, %v2627, -1e+30
    %v2660 = vsel %vm188, %v2630, -1e+30
    %v2661 = vsel %vm188, %v2632, -1e+30
    %v2662 = vsel %vm188, %v2635, -1e+30
    %v2663 = vsel %vm188, %v2637, -1e+30
    %v2664 = vsel %vm188, %v2640, -1e+30
    %v2665 = vsel %vm188, %v2642, -1e+30
    %v2666 = vsel %vm188, %v2645, -1e+30
    %v2667 = vsel %vm188, %v2647, -1e+30
    %v2668 = vsel %vm188, %v2650, -1e+30
    %v2669 = vsel %vm188, %v2652, -1e+30
    %2670 = vmax.xlane.f32.xlu0 %v2654
    %v2671 = vpop.xlane.xlu0 %2670
    %2672 = vmax.xlane.f32.xlu0 %v2655
    %v2673 = vpop.xlane.xlu0 %2672
    %2674 = vmax.xlane.f32.xlu0 %v2656
    %v2675 = vpop.xlane.xlu0 %2674
    %2676 = vmax.xlane.f32.xlu0 %v2657
    %v2677 = vpop.xlane.xlu0 %2676
    %2678 = vmax.xlane.f32.xlu0 %v2658
    %v2679 = vpop.xlane.xlu0 %2678
    %2680 = vmax.xlane.f32.xlu0 %v2659
    %v2681 = vpop.xlane.xlu0 %2680
    %2682 = vmax.xlane.f32.xlu0 %v2660
    %v2683 = vpop.xlane.xlu0 %2682
    %2684 = vmax.xlane.f32.xlu0 %v2661
    %v2685 = vpop.xlane.xlu0 %2684
    %2686 = vmax.xlane.f32.xlu0 %v2662
    %v2687 = vpop.xlane.xlu0 %2686
    %2688 = vmax.xlane.f32.xlu0 %v2663
    %v2689 = vpop.xlane.xlu0 %2688
    %2690 = vmax.xlane.f32.xlu0 %v2664
    %v2691 = vpop.xlane.xlu0 %2690
    %2692 = vmax.xlane.f32.xlu0 %v2665
    %v2693 = vpop.xlane.xlu0 %2692
    %2694 = vmax.xlane.f32.xlu0 %v2666
    %v2695 = vpop.xlane.xlu0 %2694
    %2696 = vmax.xlane.f32.xlu0 %v2667
    %v2697 = vpop.xlane.xlu0 %2696
    %2698 = vmax.xlane.f32.xlu0 %v2668
    %v2699 = vpop.xlane.xlu0 %2698
    %2700 = vmax.xlane.f32.xlu0 %v2669
    %v2701 = vpop.xlane.xlu0 %2700
    %v2702 = vsub.f32 %v2654, %v2671
    %v2703 = vsub.f32 %v2655, %v2673
    %v2704 = vsub.f32 %v2656, %v2675
    %v2705 = vsub.f32 %v2657, %v2677
    %v2706 = vsub.f32 %v2658, %v2679
    %v2707 = vsub.f32 %v2659, %v2681
    %v2708 = vsub.f32 %v2660, %v2683
    %v2709 = vsub.f32 %v2661, %v2685
    %v2710 = vsub.f32 %v2662, %v2687
    %v2711 = vsub.f32 %v2663, %v2689
    %v2712 = vsub.f32 %v2664, %v2691
    %v2713 = vsub.f32 %v2665, %v2693
    %v2714 = vsub.f32 %v2666, %v2695
    %v2715 = vsub.f32 %v2667, %v2697
    %v2716 = vsub.f32 %v2668, %v2699
    %v2717 = vsub.f32 %v2669, %v2701
    %v2718 = vmul.f32 %v2702, 1.442695
    %v2719 = vpow.pop %v2718
    %v2720 = vmul.f32 %v2703, 1.442695
    %v2721 = vpow.pop %v2720
    %v2722 = vmul.f32 %v2704, 1.442695
    %v2723 = vpow.pop %v2722
    %v2724 = vmul.f32 %v2705, 1.442695
    %v2725 = vpow.pop %v2724
    %v2726 = vmul.f32 %v2706, 1.442695
    %v2727 = vpow.pop %v2726
    %v2728 = vmul.f32 %v2707, 1.442695
    %v2729 = vpow.pop %v2728
    %v2730 = vmul.f32 %v2708, 1.442695
    %v2731 = vpow.pop %v2730
    %v2732 = vmul.f32 %v2709, 1.442695
    %v2733 = vpow.pop %v2732
    %v2734 = vmul.f32 %v2710, 1.442695
    %v2735 = vpow.pop %v2734
    %v2736 = vmul.f32 %v2711, 1.442695
    %v2737 = vpow.pop %v2736
    %v2738 = vmul.f32 %v2712, 1.442695
    %v2739 = vpow.pop %v2738
    %v2740 = vmul.f32 %v2713, 1.442695
    %v2741 = vpow.pop %v2740
    %v2742 = vmul.f32 %v2714, 1.442695
    %v2743 = vpow.pop %v2742
    %v2744 = vmul.f32 %v2715, 1.442695
    %v2745 = vpow.pop %v2744
    %v2746 = vmul.f32 %v2716, 1.442695
    %v2747 = vpow.pop %v2746
    %v2748 = vmul.f32 %v2717, 1.442695
    %v2749 = vpow.pop %v2748
    %2750 = vadd.xlane.f32.xlu0 %v2719
    %v2751 = vpop.xlane.xlu0 %2750
    %2752 = vadd.xlane.f32.xlu0 %v2721
    %v2753 = vpop.xlane.xlu0 %2752
    %2754 = vadd.xlane.f32.xlu0 %v2723
    %v2755 = vpop.xlane.xlu0 %2754
    %2756 = vadd.xlane.f32.xlu0 %v2725
    %v2757 = vpop.xlane.xlu0 %2756
    %2758 = vadd.xlane.f32.xlu0 %v2727
    %v2759 = vpop.xlane.xlu0 %2758
    %2760 = vadd.xlane.f32.xlu0 %v2729
    %v2761 = vpop.xlane.xlu0 %2760
    %2762 = vadd.xlane.f32.xlu0 %v2731
    %v2763 = vpop.xlane.xlu0 %2762
    %2764 = vadd.xlane.f32.xlu0 %v2733
    %v2765 = vpop.xlane.xlu0 %2764
    %2766 = vadd.xlane.f32.xlu0 %v2735
    %v2767 = vpop.xlane.xlu0 %2766
    %2768 = vadd.xlane.f32.xlu0 %v2737
    %v2769 = vpop.xlane.xlu0 %2768
    %2770 = vadd.xlane.f32.xlu0 %v2739
    %v2771 = vpop.xlane.xlu0 %2770
    %2772 = vadd.xlane.f32.xlu0 %v2741
    %v2773 = vpop.xlane.xlu0 %2772
    %2774 = vadd.xlane.f32.xlu0 %v2743
    %v2775 = vpop.xlane.xlu0 %2774
    %2776 = vadd.xlane.f32.xlu0 %v2745
    %v2777 = vpop.xlane.xlu0 %2776
    %2778 = vadd.xlane.f32.xlu0 %v2747
    %v2779 = vpop.xlane.xlu0 %2778
    %2780 = vadd.xlane.f32.xlu0 %v2749
    %v2781 = vpop.xlane.xlu0 %2780
    %v2782 = vrcp.pop %v2751
    %v2783 = vrcp.pop %v2753
    %v2784 = vrcp.pop %v2755
    %v2785 = vrcp.pop %v2757
    %v2786 = vrcp.pop %v2759
    %v2787 = vrcp.pop %v2761
    %v2788 = vrcp.pop %v2763
    %v2789 = vrcp.pop %v2765
    %v2790 = vrcp.pop %v2767
    %v2791 = vrcp.pop %v2769
    %v2792 = vrcp.pop %v2771
    %v2793 = vrcp.pop %v2773
    %v2794 = vrcp.pop %v2775
    %v2795 = vrcp.pop %v2777
    %v2796 = vrcp.pop %v2779
    %v2797 = vrcp.pop %v2781
    %v2798 = vmul.f32 %v2719, %v2782
    %v2799 = vmul.f32 %v2721, %v2783
    %v2800 = vmul.f32 %v2723, %v2784
    %v2801 = vmul.f32 %v2725, %v2785
    %v2802 = vmul.f32 %v2727, %v2786
    %v2803 = vmul.f32 %v2729, %v2787
    %v2804 = vmul.f32 %v2731, %v2788
    %v2805 = vmul.f32 %v2733, %v2789
    %v2806 = vmul.f32 %v2735, %v2790
    %v2807 = vmul.f32 %v2737, %v2791
    %v2808 = vmul.f32 %v2739, %v2792
    %v2809 = vmul.f32 %v2741, %v2793
    %v2810 = vmul.f32 %v2743, %v2794
    %v2811 = vmul.f32 %v2745, %v2795
    %v2812 = vmul.f32 %v2747, %v2796
    %v2813 = vmul.f32 %v2749, %v2797
    %2814 = vst [vmem:[#allocation17] sm:$0xff] %v2798
    %2815 = vst [vmem:[#allocation17 + $0x8] sm:$0xff] %v2799
    %2816 = vst [vmem:[#allocation17 + $0x10] sm:$0xff] %v2800
    %2817 = vst [vmem:[#allocation17 + $0x18] sm:$0xff] %v2801
    %2818 = vst [vmem:[#allocation17 + $0x20] sm:$0xff] %v2802
    %2819 = vst [vmem:[#allocation17 + $0x28] sm:$0xff] %v2803
    %2820 = vst [vmem:[#allocation17 + $0x30] sm:$0xff] %v2804
    %2821 = vst [vmem:[#allocation17 + $0x38] sm:$0xff] %v2805
    %2822 = vst [vmem:[#allocation17 + $0x40] sm:$0xff] %v2806
    %2823 = vst [vmem:[#allocation17 + $0x48] sm:$0xff] %v2807
    %2824 = vst [vmem:[#allocation17 + $0x50] sm:$0xff] %v2808
    %2825 = vst [vmem:[#allocation17 + $0x58] sm:$0xff] %v2809
    %2826 = vst [vmem:[#allocation17 + $0x60] sm:$0xff] %v2810
    %2827 = vst [vmem:[#allocation17 + $0x68] sm:$0xff] %v2811
    %2828 = vst [vmem:[#allocation17 + $0x70] sm:$0xff] %v2812
    %2829 = vst [vmem:[#allocation17 + $0x78] sm:$0xff] %v2813
    // Predicated region
    $region90: #{tpu_custom_call.1} parent=1 // pred_check
      _
    $region91: #{tpu_custom_call.1} parent=1 // pred_check_branch
      %2831 = sbr.rel (0) target = $region93
    $region92: #{tpu_custom_call.1} parent=1 // pred_region
      %2833 = vsyncadd [#allocation4], 0
      %s2834 = sshll.u32 [#allocation17], 4
      %s2835 = int_to_ptr.vmem [resolvable:$true] %s2834
      %s2836 = sshll.u32 %s13, 4
      %s2837 = int_to_ptr.hbm [resolvable:$true] %s2836
      %2842 = dma.vmem_to_hbm [thread:$0]  %s2835, 2048, %s2837, [#allocation4], 128, 128, 8
    $region93: #{tpu_custom_call.1} parent=1 // pred_fallthru
      _
    // Predicated region
    $region94: #{tpu_custom_call.1} parent=1 // pred_check
      _
    $region95: #{tpu_custom_call.1} parent=1 // pred_check_branch
      %2844 = sbr.rel (0) target = $region97
    $region96: #{tpu_custom_call.1} parent=1 // pred_region
      %2846 = dma.done [#allocation4], 2048
    $region97: #{tpu_custom_call.1} parent=1 // pred_fallthru
      _
    %2847 = vsyncpa [#allocation3], 1
    %2848 = vsyncpa [#allocation6], 1
    %2849 = vsyncpa [#allocation9], 1
    %2850 = vsyncpa [#allocation12], 1
    %2851 = vsyncpa [#allocation15], 1
    %2852 = vsyncpa [#allocation4], 1

</llo_original>
